<compile_context>
chip_gen: v7x
topology: tpu7x:2x2x1
jax: 0.10.0
libtpu: 0.0.40
codegen_flags: <defaults>
</compile_context>

<pallas_src>
import functools

import jax
import jax.numpy as jnp
from jax import lax
from jax.experimental import pallas as pl
from jax.experimental.pallas import tpu as pltpu


def _mlp_kernel(n_layers, precision, x_ref, *refs):
    """refs = (wT0, b0, wT1, b1, ..., wT_{L-1}, b_{L-1}, out_ref).

    x_ref:   (row_tile, d_0)    natural row-major block (contiguous in HBM)
    wT_i:    (d_{i+1}, d_i)     transposed weight, VMEM-resident
    b_i:     (d_{i+1}, 1)       f32, broadcasts over lanes
    out_ref: (d_L, row_tile)    rows on the 128-lane axis (lane-dense store)
    """
    out_ref = refs[-1]
    params = refs[:-1]
    compute_dtype = x_ref.dtype

    # Layer 0: contract W0^T's d_0 axis (dim 1) against x's feature axis
    # (dim 1) -> (d_1, row_tile).  Rows land on the lane axis with no
    # wrapper-side HBM transpose; the MXU operand path absorbs orientation.
    h = lax.dot_general(
        params[0][...], x_ref[...],
        dimension_numbers=(((1,), (1,)), ((), ())),
        precision=precision,
        preferred_element_type=jnp.float32) + params[1][...]
    if n_layers > 1:                               # ReLU on all but last layer
        h = jnp.maximum(h, 0.0).astype(compute_dtype)

    for i in range(1, n_layers):
        h = lax.dot_general(
            params[2 * i][...], h,
            dimension_numbers=(((1,), (0,)), ((), ())),
            precision=precision,
            preferred_element_type=jnp.float32) + params[2 * i + 1][...]
        if i < n_layers - 1:
            h = jnp.maximum(h, 0.0).astype(compute_dtype)

    out_ref[...] = h.astype(out_ref.dtype)


def _pick_tile(rows, row_tile):
    """Row tile (lane axis) and vmem limit, with generation-aware caps.

    Per-step VMEM is ~0.6 KB/row in f32 (double-buffered (tile,16) input +
    (8,tile) output blocks plus a few live (32,tile) temps).  v7x has only
    64 MiB VMEM/TC -> cap at 16K rows (stays under the 32 MiB default scoped
    limit); v5e/v6e (128 MiB) can take 32K with the scoped limit raised.
    """
    cap, vmem_limit = 16384, None
    try:
        info = pltpu.get_tpu_info()
        if getattr(info, "vmem_capacity_bytes", 0) >= (96 << 20):  # v5e/v6e
            cap, vmem_limit = 32768, 64 << 20
    except Exception:
        pass
    tile = max(128, (min(row_tile, cap) // 128) * 128)
    if rows <= tile:
        return rows, vmem_limit          # single full-extent block
    return tile, vmem_limit


def mlp_pallas(x, weights, biases, *, row_tile=16384, compute_dtype=None,
               transpose_output=True):
    """x: (batch, set, filter). weights[i]: (d_i, d_{i+1}). biases[i]: (d_{i+1},)."""
    batch, set_size, filt = x.shape
    assert filt == weights[0].shape[0]
    d_out = weights[-1].shape[1]
    n_layers = len(weights)
    rows = batch * set_size
    out_dtype = x.dtype

    if compute_dtype is None:
        compute_dtype = x.dtype
    compute_dtype = jnp.dtype(compute_dtype)
    # f32 path: force full-precision MXU passes so we match an f32 reference;
    # bf16 path uses the native single-pass MXU route.
    precision = (jax.lax.Precision.HIGHEST
                 if compute_dtype == jnp.float32 else None)

    x2 = x.reshape(rows, filt).astype(compute_dtype)    # natural layout, no T
    wts = [w.T.astype(compute_dtype) for w in weights]  # (d_{i+1}, d_i), tiny
    bcols = [b.reshape(-1, 1).astype(jnp.float32) for b in biases]

    tile, vmem_limit = _pick_tile(rows, row_tile)
    grid = (pl.cdiv(rows, tile),)            # ragged tail masked by Pallas

    in_specs = [pl.BlockSpec((tile, filt), lambda i: (i, 0))]
    for wt, bc in zip(wts, bcols):
        # Constant index -> weights/biases stay resident in VMEM across steps.
        in_specs.append(pl.BlockSpec(wt.shape, lambda i: (0, 0)))
        in_specs.append(pl.BlockSpec(bc.shape, lambda i: (0, 0)))

    out_spec = pl.BlockSpec((d_out, tile), lambda i: (0, i))

    flops = 2 * rows * sum(int(w.shape[0]) * int(w.shape[1]) for w in weights)
    bytes_accessed = (rows * filt * compute_dtype.itemsize
                      + rows * d_out * jnp.dtype(out_dtype).itemsize
                      + sum(int(w.size) for w in weights) * compute_dtype.itemsize)

    kernel = functools.partial(_mlp_kernel, n_layers, precision)

    out_t = pl.pallas_call(
        kernel,
        out_shape=jax.ShapeDtypeStruct((d_out, rows), out_dtype),
        grid=grid,
        in_specs=in_specs,
        out_specs=out_spec,
        compiler_params=pltpu.CompilerParams(
            dimension_semantics=("parallel",),
            vmem_limit_bytes=vmem_limit),
        cost_estimate=pl.CostEstimate(
            flops=flops, transcendentals=0, bytes_accessed=bytes_accessed),
    )(x2, *[p for wb in zip(wts, bcols) for p in wb])

    if not transpose_output:
        return out_t                     # (d_out, rows): lane-dense, for fusion
    # Undo the orientation to match the module: (d_out, rows) -> (B, S, d_out).
    return out_t.T.reshape(batch, set_size, d_out)


def mlp_reference(x, weights, biases):
    batch, set_size, filt = x.shape
    h = x.reshape(batch * set_size, filt).astype(jnp.float32)
    n = len(weights)
    for i in range(n):
        h = jnp.dot(h, weights[i].astype(jnp.float32),
                    precision=jax.lax.Precision.HIGHEST)
        h = h + biases[i].astype(jnp.float32)
        if i < n - 1:
            h = jnp.maximum(h, 0.0)
    return h.reshape(batch, set_size, -1)


def _make_params(key, dimensions):
    keys = jax.random.split(key, 2 * (len(dimensions) - 1))
    weights, biases = [], []
    for li in range(len(dimensions) - 1):
        d_in, d_o = dimensions[li], dimensions[li + 1]
        bound = 1.0 / (d_in ** 0.5)          # ~ nn.Linear uniform init scale
        w = jax.random.uniform(keys[2 * li], (d_in, d_o),
                               minval=-bound, maxval=bound, dtype=jnp.float32)
        b = jax.random.uniform(keys[2 * li + 1], (d_o,),
                               minval=-bound, maxval=bound, dtype=jnp.float32)
        weights.append(w)
        biases.append(b)
    return weights, biases


if __name__ == "__main__":
    # MLP(dimensions=[16, 32, 32, 8]): Linear(16,32)+ReLU, Linear(32,32)+ReLU,
    # Linear(32,8).
    dimensions = (16, 32, 32, 8)

    key = jax.random.PRNGKey(0)
    kp, kx1, kx2 = jax.random.split(key, 3)
    weights, biases = _make_params(kp, dimensions)

    # Small shape from the spec: single full-extent block (grid = 1).
    batch, set_size = 2, 8
    x = jax.random.normal(kx1, (batch, set_size, dimensions[0]),
                          dtype=jnp.float32)
    out = jax.block_until_ready(mlp_pallas(x, weights, biases))
    ref = mlp_reference(x, weights, biases)
    assert out.shape == (batch, set_size, dimensions[-1])
    assert jnp.allclose(out, ref, atol=1e-4, rtol=1e-4)

    # Larger row count with a small forced row_tile to exercise the tiled,
    # lane-dense path with a ragged tail (rows = 1200, tile = 512, grid = 3).
    batch2, set2 = 3, 400
    x2 = jax.random.normal(kx2, (batch2, set2, dimensions[0]),
                           dtype=jnp.float32)
    out2 = jax.block_until_ready(mlp_pallas(x2, weights, biases, row_tile=512))
    ref2 = mlp_reference(x2, weights, biases)
    assert out2.shape == (batch2, set2, dimensions[-1])
    assert jnp.allclose(out2, ref2, atol=1e-4, rtol=1e-4)

    # Optional bf16 compute path (halves HBM bytes; f32 accumulation kept).
    out3 = jax.block_until_ready(
        mlp_pallas(x2, weights, biases, compute_dtype=jnp.bfloat16))
    assert out3.shape == (batch2, set2, dimensions[-1])
    assert jnp.allclose(out3.astype(jnp.float32), ref2, atol=5e-2, rtol=5e-2)

    print("KERNEL_OK")
</pallas_src>

<mosaic_0001>
module attributes {stable_mosaic.version = 11 : i64} {
  func.func @_mlp_kernel(%arg0: i32, %arg1: memref<16x16xf32, #tpu.memory_space<vmem>>, %arg2: memref<32x16xf32, #tpu.memory_space<vmem>>, %arg3: memref<32x1xf32, #tpu.memory_space<vmem>>, %arg4: memref<32x32xf32, #tpu.memory_space<vmem>>, %arg5: memref<32x1xf32, #tpu.memory_space<vmem>>, %arg6: memref<8x32xf32, #tpu.memory_space<vmem>>, %arg7: memref<8x1xf32, #tpu.memory_space<vmem>>, %arg8: memref<8x16xf32, #tpu.memory_space<vmem>>) attributes {dimension_semantics = [#tpu.dimension_semantics<parallel>], iteration_bounds = array<i64: 1>, scalar_prefetch = 0 : i64, scratch_operands = 0 : i64, tpu.core_type = #tpu.core_type<tc>, window_params = [{transform_indices = @transform_0, window_bounds = array<i64: 16, 16>}, {pipeline_mode = #tpu.pipeline_mode<synchronous>, transform_indices = @transform_1, window_bounds = array<i64: 32, 16>}, {pipeline_mode = #tpu.pipeline_mode<synchronous>, transform_indices = @transform_2, window_bounds = array<i64: 32, 1>}, {pipeline_mode = #tpu.pipeline_mode<synchronous>, transform_indices = @transform_3, window_bounds = array<i64: 32, 32>}, {pipeline_mode = #tpu.pipeline_mode<synchronous>, transform_indices = @transform_4, window_bounds = array<i64: 32, 1>}, {pipeline_mode = #tpu.pipeline_mode<synchronous>, transform_indices = @transform_5, window_bounds = array<i64: 8, 32>}, {pipeline_mode = #tpu.pipeline_mode<synchronous>, transform_indices = @transform_6, window_bounds = array<i64: 8, 1>}, {transform_indices = @transform_7, window_bounds = array<i64: 8, 16>}]} {
    %c0 = arith.constant 0 : index
    %c0_0 = arith.constant 0 : index
    %0 = vector.load %arg2[%c0, %c0_0] : memref<32x16xf32, #tpu.memory_space<vmem>>, vector<32x16xf32>
    %c0_1 = arith.constant 0 : index
    %c0_2 = arith.constant 0 : index
    %1 = vector.load %arg1[%c0_1, %c0_2] : memref<16x16xf32, #tpu.memory_space<vmem>>, vector<16x16xf32>
    %cst = arith.constant dense<0.000000e+00> : vector<32x16xf32>
    %2 = tpu.matmul %0, %1, %cst {dimension_numbers = #tpu.dot_dimension_numbers<[1], [1], [0], [0], [0, 0, 1, 0], [], []>, precision = #tpu.contract_precision<fp32>} : vector<32x16xf32>, vector<16x16xf32>, vector<32x16xf32> -> vector<32x16xf32>
    %c0_3 = arith.constant 0 : index
    %c0_4 = arith.constant 0 : index
    %3 = vector.load %arg3[%c0_3, %c0_4] : memref<32x1xf32, #tpu.memory_space<vmem>>, vector<32x1xf32>
    %4 = vector.broadcast %3 : vector<32x1xf32> to vector<32x16xf32>
    %5 = arith.addf %2, %4 : vector<32x16xf32>
    %cst_5 = arith.constant 0.000000e+00 : f32
    %6 = vector.broadcast %cst_5 : f32 to vector<32x16xf32>
    %7 = arith.maximumf %5, %6 : vector<32x16xf32>
    %c0_6 = arith.constant 0 : index
    %c0_7 = arith.constant 0 : index
    %8 = vector.load %arg4[%c0_6, %c0_7] : memref<32x32xf32, #tpu.memory_space<vmem>>, vector<32x32xf32>
    %cst_8 = arith.constant dense<0.000000e+00> : vector<32x16xf32>
    %9 = tpu.matmul %8, %7, %cst_8 {dimension_numbers = #tpu.dot_dimension_numbers<[1], [0], [0], [1], [0, 0, 1, 1], [], []>, precision = #tpu.contract_precision<fp32>} : vector<32x32xf32>, vector<32x16xf32>, vector<32x16xf32> -> vector<32x16xf32>
    %c0_9 = arith.constant 0 : index
    %c0_10 = arith.constant 0 : index
    %10 = vector.load %arg5[%c0_9, %c0_10] : memref<32x1xf32, #tpu.memory_space<vmem>>, vector<32x1xf32>
    %11 = vector.broadcast %10 : vector<32x1xf32> to vector<32x16xf32>
    %12 = arith.addf %9, %11 : vector<32x16xf32>
    %cst_11 = arith.constant 0.000000e+00 : f32
    %13 = vector.broadcast %cst_11 : f32 to vector<32x16xf32>
    %14 = arith.maximumf %12, %13 : vector<32x16xf32>
    %c0_12 = arith.constant 0 : index
    %c0_13 = arith.constant 0 : index
    %15 = vector.load %arg6[%c0_12, %c0_13] : memref<8x32xf32, #tpu.memory_space<vmem>>, vector<8x32xf32>
    %cst_14 = arith.constant dense<0.000000e+00> : vector<8x16xf32>
    %16 = tpu.matmul %15, %14, %cst_14 {dimension_numbers = #tpu.dot_dimension_numbers<[1], [0], [0], [1], [0, 0, 1, 1], [], []>, precision = #tpu.contract_precision<fp32>} : vector<8x32xf32>, vector<32x16xf32>, vector<8x16xf32> -> vector<8x16xf32>
    %c0_15 = arith.constant 0 : index
    %c0_16 = arith.constant 0 : index
    %17 = vector.load %arg7[%c0_15, %c0_16] : memref<8x1xf32, #tpu.memory_space<vmem>>, vector<8x1xf32>
    %18 = vector.broadcast %17 : vector<8x1xf32> to vector<8x16xf32>
    %19 = arith.addf %16, %18 : vector<8x16xf32>
    %c0_17 = arith.constant 0 : index
    %c0_18 = arith.constant 0 : index
    %20 = vector.load %arg8[%c0_17, %c0_18] : memref<8x16xf32, #tpu.memory_space<vmem>>, vector<8x16xf32>
    tpu.vector_store %arg8[%c0_17, %c0_18], %19 {strides = array<i32>} : memref<8x16xf32, #tpu.memory_space<vmem>>, vector<8x16xf32>,
    return
  }
  func.func @transform_0(%arg0: i32) -> (i32, i32) {
    %c0_i32 = arith.constant 0 : i32
    %c0_i32_0 = arith.constant 0 : i32
    return %arg0, %c0_i32 : i32, i32
  }
  func.func @transform_1(%arg0: i32) -> (i32, i32) {
    %c0_i32 = arith.constant 0 : i32
    %c0_i32_0 = arith.constant 0 : i32
    %c0_i32_1 = arith.constant 0 : i32
    return %c0_i32, %c0_i32_0 : i32, i32
  }
  func.func @transform_2(%arg0: i32) -> (i32, i32) {
    %c0_i32 = arith.constant 0 : i32
    %c0_i32_0 = arith.constant 0 : i32
    %c0_i32_1 = arith.constant 0 : i32
    return %c0_i32, %c0_i32_0 : i32, i32
  }
  func.func @transform_3(%arg0: i32) -> (i32, i32) {
    %c0_i32 = arith.constant 0 : i32
    %c0_i32_0 = arith.constant 0 : i32
    %c0_i32_1 = arith.constant 0 : i32
    return %c0_i32, %c0_i32_0 : i32, i32
  }
  func.func @transform_4(%arg0: i32) -> (i32, i32) {
    %c0_i32 = arith.constant 0 : i32
    %c0_i32_0 = arith.constant 0 : i32
    %c0_i32_1 = arith.constant 0 : i32
    return %c0_i32, %c0_i32_0 : i32, i32
  }
  func.func @transform_5(%arg0: i32) -> (i32, i32) {
    %c0_i32 = arith.constant 0 : i32
    %c0_i32_0 = arith.constant 0 : i32
    %c0_i32_1 = arith.constant 0 : i32
    return %c0_i32, %c0_i32_0 : i32, i32
  }
  func.func @transform_6(%arg0: i32) -> (i32, i32) {
    %c0_i32 = arith.constant 0 : i32
    %c0_i32_0 = arith.constant 0 : i32
    %c0_i32_1 = arith.constant 0 : i32
    return %c0_i32, %c0_i32_0 : i32, i32
  }
  func.func @transform_7(%arg0: i32) -> (i32, i32) {
    %c0_i32 = arith.constant 0 : i32
    %c0_i32_0 = arith.constant 0 : i32
    return %c0_i32, %arg0 : i32, i32
  }
}

</mosaic_0001>

<llo_original>
// kernel: tpu_custom_call.1
$region0: #{tpu_custom_call.1}
  #allocation0 [shape = 'u32[]', space=smem, size = 0x4, offset = 0x4, fixed_abs, tag = 'smem constant byte address 0x4 - core index']
  #allocation1 [shape = 'u32[144,128]{1,0:T(1,128)}', space=vmem, size = 0x12000, scoped, tag = 'internal scratch']
  %s0 = inlined_call_operand.vmem [shape: f32[16,16], index: 0, kind: input, shape index: {}]
  %s1 = inlined_call_operand.vmem [shape: f32[32,16], index: 1, kind: input, shape index: {}]
  %s2 = inlined_call_operand.vmem [shape: f32[32,1], index: 2, kind: input, shape index: {}]
  %s3 = inlined_call_operand.vmem [shape: f32[32,32], index: 3, kind: input, shape index: {}]
  %s4 = inlined_call_operand.vmem [shape: f32[32,1], index: 4, kind: input, shape index: {}]
  %s5 = inlined_call_operand.vmem [shape: f32[8,32], index: 5, kind: input, shape index: {}]
  %s6 = inlined_call_operand.vmem [shape: f32[8,1], index: 6, kind: input, shape index: {}]
  %s7 = inlined_call_operand.hbm [shape: f32[8,16], index: 7, kind: output, shape index: {}]
  %s8 = sld [smem:[#allocation0]]
  $region38: #{tpu_custom_call.1} parent=0
    _
  %s10 = ssub.s32 1, %s8
  %s11 = scalar_select 0, %s10, %s8
  $region1: #{tpu_custom_call.1} parent=0
    #allocation2 [shape = 'u8[4096]{0}', space=vmem, size = 0x1000, scoped, tag = 'output window, operand 0, single buffered']
    #allocation3 [shape = 's32[1]{0}', space=sflag, size = 0x4, scoped, tag = 'scoped memory for tpu_custom_call.1']
    %12 = vsyncpa [#allocation3], 0
    // Predicated region
    $region2: #{tpu_custom_call.1} parent=1 // pred_check
      _
    $region3: #{tpu_custom_call.1} parent=1 // pred_check_branch
      %14 = sbr.rel (0) target = $region5
    $region4: #{tpu_custom_call.1} parent=1 // pred_region
      _
    $region5: #{tpu_custom_call.1} parent=1 // pred_fallthru
      _
    // Predicated region
    $region6: #{tpu_custom_call.1} parent=1 // pred_check
      _
    $region7: #{tpu_custom_call.1} parent=1 // pred_check_branch
      %16 = sbr.rel (0) target = $region9
    $region8: #{tpu_custom_call.1} parent=1 // pred_region
      _
    $region9: #{tpu_custom_call.1} parent=1 // pred_fallthru
      _
    // Predicated region
    $region10: #{tpu_custom_call.1} parent=1 // pred_check
      _
    $region11: #{tpu_custom_call.1} parent=1 // pred_check_branch
      %18 = sbr.rel (0) target = $region13
    $region12: #{tpu_custom_call.1} parent=1 // pred_region
      _
    $region13: #{tpu_custom_call.1} parent=1 // pred_fallthru
      _
    // Predicated region
    $region14: #{tpu_custom_call.1} parent=1 // pred_check
      _
    $region15: #{tpu_custom_call.1} parent=1 // pred_check_branch
      %20 = sbr.rel (0) target = $region17
    $region16: #{tpu_custom_call.1} parent=1 // pred_region
      _
    $region17: #{tpu_custom_call.1} parent=1 // pred_fallthru
      _
    // Predicated region
    $region18: #{tpu_custom_call.1} parent=1 // pred_check
      _
    $region19: #{tpu_custom_call.1} parent=1 // pred_check_branch
      %22 = sbr.rel (0) target = $region21
    $region20: #{tpu_custom_call.1} parent=1 // pred_region
      _
    $region21: #{tpu_custom_call.1} parent=1 // pred_fallthru
      _
    // Predicated region
    $region22: #{tpu_custom_call.1} parent=1 // pred_check
      _
    $region23: #{tpu_custom_call.1} parent=1 // pred_check_branch
      %24 = sbr.rel (0) target = $region25
    $region24: #{tpu_custom_call.1} parent=1 // pred_region
      _
    $region25: #{tpu_custom_call.1} parent=1 // pred_fallthru
      _
    // Predicated region
    $region26: #{tpu_custom_call.1} parent=1 // pred_check
      _
    $region27: #{tpu_custom_call.1} parent=1 // pred_check_branch
      %26 = sbr.rel (0) target = $region29
    $region28: #{tpu_custom_call.1} parent=1 // pred_region
      _
    $region29: #{tpu_custom_call.1} parent=1 // pred_fallthru
      _
    %v27 = vld [vmem:[%s1] sm:$0xff]
    %v28 = vld [vmem:[%s1 + $0x8] sm:$0xff]
    %v29 = vld [vmem:[%s1 + $0x10] sm:$0xff]
    %v30 = vld [vmem:[%s1 + $0x18] sm:$0xff]
    %v31 = vld [vmem:[%s0] sm:$0xff]
    %v32 = vld [vmem:[%s0 + $0x8] sm:$0xff]
    %v33 = vld [vmem:[%s2] sm:$0xff]
    %v34 = vld [vmem:[%s2 + $0x8] sm:$0xff]
    %v35 = vld [vmem:[%s2 + $0x10] sm:$0xff]
    %v36 = vld [vmem:[%s2 + $0x18] sm:$0xff]
    %38 = vset.pattern.permute.xlu0 0
    %39 = vperm.xlu0 %38, %v33
    %v40 = vpop.permute.xlu0 %39
    %43 = vset.pattern.permute.xlu0 0
    %44 = vperm.xlu0 %43, %v34
    %v45 = vpop.permute.xlu0 %44
    %48 = vset.pattern.permute.xlu0 0
    %49 = vperm.xlu0 %48, %v35
    %v50 = vpop.permute.xlu0 %49
    %53 = vset.pattern.permute.xlu0 0
    %54 = vperm.xlu0 %53, %v36
    %v55 = vpop.permute.xlu0 %54
    %vm57 = vcmask 130048
    %v59 = vsel %vm57, %v27, 0
    %v62 = vsel %vm57, %v28, 0
    %v65 = vsel %vm57, %v29, 0
    %v68 = vsel %vm57, %v30, 0
    %v71 = vsel %vm57, %v31, 0
    %v74 = vsel %vm57, %v32, 0
    %76 = vmatprep.subr.mxu0 0.0
    %v77 = vand.u32 %v71, 4294901760
    %78 = vmatpush1.xpose.msra.mxu0 %v77
    %79 = vmatprep.subr.mxu0 0.0
    %v80 = vand.u32 %v74, 4294901760
    %81 = vmatpush1.xpose.msra.mxu0 %v80
    %82 = vmatprep.subr.mxu0 0.0
    %83 = vmatpush1.xpose.msra.mxu0 0.0
    %84 = vmatprep.subr.mxu0 0.0
    %85 = vmatpush1.xpose.msra.mxu0 0.0
    %86 = vmatprep.subr.mxu0 0.0
    %87 = vmatpush1.xpose.msra.mxu0 0.0
    %88 = vmatprep.subr.mxu0 0.0
    %89 = vmatpush1.xpose.msra.mxu0 0.0
    %90 = vmatprep.subr.mxu0 0.0
    %91 = vmatpush1.xpose.msra.mxu0 0.0
    %92 = vmatprep.subr.mxu0 0.0
    %93 = vmatpush1.xpose.msra.mxu0 0.0
    %94 = vmatprep.subr.mxu0 0.0
    %95 = vmatpush1.xpose.msra.mxu0 0.0
    %96 = vmatprep.subr.mxu0 0.0
    %97 = vmatpush1.xpose.msra.mxu0 0.0
    %98 = vmatprep.subr.mxu0 0.0
    %99 = vmatpush1.xpose.msra.mxu0 0.0
    %100 = vmatprep.subr.mxu0 0.0
    %101 = vmatpush1.xpose.msra.mxu0 0.0
    %102 = vmatprep.subr.mxu0 0.0
    %103 = vmatpush1.xpose.msra.mxu0 0.0
    %104 = vmatprep.subr.mxu0 0.0
    %105 = vmatpush1.xpose.msra.mxu0 0.0
    %106 = vmatprep.subr.mxu0 0.0
    %107 = vmatpush1.xpose.msra.mxu0 0.0
    %108 = vmatprep.subr.mxu0 0.0
    %109 = vmatpush1.xpose.msra.mxu0 0.0
    %110 = vmatprep.subr.mxu0 0.0
    %111 = vmatpush1.xpose.msra.mxu0 0.0
    %112 = vmatprep.subr.mxu0 0.0
    %113 = vmatpush1.xpose.msra.mxu0 0.0
    %114 = vmatprep.subr.mxu0 0.0
    %115 = vmatpush1.xpose.msra.mxu0 0.0
    %116 = vmatprep.subr.mxu0 0.0
    %117 = vmatpush1.xpose.msra.mxu0 0.0
    %118 = vmatprep.subr.mxu0 0.0
    %119 = vmatpush1.xpose.msra.mxu0 0.0
    %120 = vmatprep.subr.mxu0 0.0
    %121 = vmatpush1.xpose.msra.mxu0 0.0
    %122 = vmatprep.subr.mxu0 0.0
    %123 = vmatpush1.xpose.msra.mxu0 0.0
    %124 = vmatprep.subr.mxu0 0.0
    %125 = vmatpush1.xpose.msra.mxu0 0.0
    %126 = vmatprep.subr.mxu0 0.0
    %127 = vmatpush1.xpose.msra.mxu0 0.0
    %128 = vmatprep.subr.mxu0 0.0
    %129 = vmatpush1.xpose.msra.mxu0 0.0
    %130 = vmatprep.subr.mxu0 0.0
    %131 = vmatpush1.xpose.msra.mxu0 0.0
    %132 = vmatprep.subr.mxu0 0.0
    %133 = vmatpush1.xpose.msra.mxu0 0.0
    %134 = vmatprep.subr.mxu0 0.0
    %135 = vmatpush1.xpose.msra.mxu0 0.0
    %136 = vmatprep.subr.mxu0 0.0
    %137 = vmatpush1.xpose.msra.mxu0 0.0
    %138 = vmatprep.subr.mxu0 0.0
    %139 = vmatpush1.xpose.msra.mxu0 0.0
    %140 = vmatprep.subr.mxu0 0.0
    %141 = vmatpush1.xpose.msra.mxu0 0.0
    %142 = vmatprep.mubr.f32.mxu0 0.0
    %v143 = vand.u32 %v59, 4294901760
    %v144 = vsub.f32 %v59, %v143
    %v145 = vand.u32 %v144, 4294901760
    %v146 = vsub.f32 %v144, %v145
    %v147 = vand.u32 %v146, 4294901760
    %148 = vmatmul.mubr.f32.gmra.mrb[0].mxu0 %v147
    %v149 = vpop.f32.mrb[0].mxu0
    %v150 = vadd.f32 %v40, %v149
    %v151 = vpop.f32.mrb[0].mxu0
    %152 = vmatprep.mubr.f32.mxu0 0.0
    %v153 = vand.u32 %v62, 4294901760
    %v154 = vsub.f32 %v62, %v153
    %v155 = vand.u32 %v154, 4294901760
    %v156 = vsub.f32 %v154, %v155
    %v157 = vand.u32 %v156, 4294901760
    %158 = vmatmul.mubr.f32.gmra.mrb[0].mxu0 %v157
    %v159 = vpop.f32.mrb[0].mxu0
    %v160 = vadd.f32 %v45, %v159
    %v161 = vpop.f32.mrb[0].mxu0
    %162 = vmatprep.mubr.f32.mxu0 0.0
    %v163 = vand.u32 %v65, 4294901760
    %v164 = vsub.f32 %v65, %v163
    %v165 = vand.u32 %v164, 4294901760
    %v166 = vsub.f32 %v164, %v165
    %v167 = vand.u32 %v166, 4294901760
    %168 = vmatmul.mubr.f32.gmra.mrb[0].mxu0 %v167
    %v169 = vpop.f32.mrb[0].mxu0
    %v170 = vadd.f32 %v50, %v169
    %v171 = vpop.f32.mrb[0].mxu0
    %172 = vmatprep.mubr.f32.mxu0 0.0
    %v173 = vand.u32 %v68, 4294901760
    %v174 = vsub.f32 %v68, %v173
    %v175 = vand.u32 %v174, 4294901760
    %v176 = vsub.f32 %v174, %v175
    %v177 = vand.u32 %v176, 4294901760
    %178 = vmatmul.mubr.f32.gmra.mrb[0].mxu0 %v177
    %v179 = vpop.f32.mrb[0].mxu0
    %v180 = vadd.f32 %v55, %v179
    %v181 = vpop.f32.mrb[0].mxu0
    %182 = vdwg.mxu0
    %183 = vmatprep.subr.mxu0 0.0
    %v184 = vand.u32 %v71, 4294901760
    %v185 = vsub.f32 %v71, %v184
    %v186 = vand.u32 %v185, 4294901760
    %v187 = vsub.f32 %v185, %v186
    %v188 = vand.u32 %v187, 4294901760
    %189 = vmatpush1.xpose.msra.mxu0 %v188
    %190 = vmatprep.subr.mxu0 0.0
    %v191 = vand.u32 %v74, 4294901760
    %v192 = vsub.f32 %v74, %v191
    %v193 = vand.u32 %v192, 4294901760
    %v194 = vsub.f32 %v192, %v193
    %v195 = vand.u32 %v194, 4294901760
    %196 = vmatpush1.xpose.msra.mxu0 %v195
    %197 = vmatprep.subr.mxu0 0.0
    %198 = vmatpush1.xpose.msra.mxu0 0.0
    %199 = vmatprep.subr.mxu0 0.0
    %200 = vmatpush1.xpose.msra.mxu0 0.0
    %201 = vmatprep.subr.mxu0 0.0
    %202 = vmatpush1.xpose.msra.mxu0 0.0
    %203 = vmatprep.subr.mxu0 0.0
    %204 = vmatpush1.xpose.msra.mxu0 0.0
    %205 = vmatprep.subr.mxu0 0.0
    %206 = vmatpush1.xpose.msra.mxu0 0.0
    %207 = vmatprep.subr.mxu0 0.0
    %208 = vmatpush1.xpose.msra.mxu0 0.0
    %209 = vmatprep.subr.mxu0 0.0
    %210 = vmatpush1.xpose.msra.mxu0 0.0
    %211 = vmatprep.subr.mxu0 0.0
    %212 = vmatpush1.xpose.msra.mxu0 0.0
    %213 = vmatprep.subr.mxu0 0.0
    %214 = vmatpush1.xpose.msra.mxu0 0.0
    %215 = vmatprep.subr.mxu0 0.0
    %216 = vmatpush1.xpose.msra.mxu0 0.0
    %217 = vmatprep.subr.mxu0 0.0
    %218 = vmatpush1.xpose.msra.mxu0 0.0
    %219 = vmatprep.subr.mxu0 0.0
    %220 = vmatpush1.xpose.msra.mxu0 0.0
    %221 = vmatprep.subr.mxu0 0.0
    %222 = vmatpush1.xpose.msra.mxu0 0.0
    %223 = vmatprep.subr.mxu0 0.0
    %224 = vmatpush1.xpose.msra.mxu0 0.0
    %225 = vmatprep.subr.mxu0 0.0
    %226 = vmatpush1.xpose.msra.mxu0 0.0
    %227 = vmatprep.subr.mxu0 0.0
    %228 = vmatpush1.xpose.msra.mxu0 0.0
    %229 = vmatprep.subr.mxu0 0.0
    %230 = vmatpush1.xpose.msra.mxu0 0.0
    %231 = vmatprep.subr.mxu0 0.0
    %232 = vmatpush1.xpose.msra.mxu0 0.0
    %233 = vmatprep.subr.mxu0 0.0
    %234 = vmatpush1.xpose.msra.mxu0 0.0
    %235 = vmatprep.subr.mxu0 0.0
    %236 = vmatpush1.xpose.msra.mxu0 0.0
    %237 = vmatprep.subr.mxu0 0.0
    %238 = vmatpush1.xpose.msra.mxu0 0.0
    %239 = vmatprep.subr.mxu0 0.0
    %240 = vmatpush1.xpose.msra.mxu0 0.0
    %241 = vmatprep.subr.mxu0 0.0
    %242 = vmatpush1.xpose.msra.mxu0 0.0
    %243 = vmatprep.subr.mxu0 0.0
    %244 = vmatpush1.xpose.msra.mxu0 0.0
    %245 = vmatprep.subr.mxu0 0.0
    %246 = vmatpush1.xpose.msra.mxu0 0.0
    %247 = vmatprep.subr.mxu0 0.0
    %248 = vmatpush1.xpose.msra.mxu0 0.0
    %249 = vmatprep.subr.mxu0 0.0
    %250 = vmatpush1.xpose.msra.mxu0 0.0
    %251 = vmatprep.subr.mxu0 0.0
    %252 = vmatpush1.xpose.msra.mxu0 0.0
    %253 = vmatprep.subr.mxu0 0.0
    %254 = vmatpush1.xpose.msra.mxu0 0.0
    %255 = vmatprep.subr.mxu0 0.0
    %256 = vmatpush1.xpose.msra.mxu0 0.0
    %257 = vmatprep.mubr.f32.mxu0 0.0
    %v258 = vand.u32 %v59, 4294901760
    %259 = vmatmul.mubr.f32.gmra.mrb[0].mxu0 %v258
    %v260 = vpop.f32.mrb[0].mxu0
    %v261 = vadd.f32 %v150, %v260
    %v262 = vpop.f32.mrb[0].mxu0
    %263 = vmatprep.mubr.f32.mxu0 0.0
    %v264 = vand.u32 %v62, 4294901760
    %265 = vmatmul.mubr.f32.gmra.mrb[0].mxu0 %v264
    %v266 = vpop.f32.mrb[0].mxu0
    %v267 = vadd.f32 %v160, %v266
    %v268 = vpop.f32.mrb[0].mxu0
    %269 = vmatprep.mubr.f32.mxu0 0.0
    %v270 = vand.u32 %v65, 4294901760
    %271 = vmatmul.mubr.f32.gmra.mrb[0].mxu0 %v270
    %v272 = vpop.f32.mrb[0].mxu0
    %v273 = vadd.f32 %v170, %v272
    %v274 = vpop.f32.mrb[0].mxu0
    %275 = vmatprep.mubr.f32.mxu0 0.0
    %v276 = vand.u32 %v68, 4294901760
    %277 = vmatmul.mubr.f32.gmra.mrb[0].mxu0 %v276
    %v278 = vpop.f32.mrb[0].mxu0
    %v279 = vadd.f32 %v180, %v278
    %v280 = vpop.f32.mrb[0].mxu0
    %281 = vdwg.mxu0
    %282 = vmatprep.subr.mxu0 0.0
    %v283 = vand.u32 %v71, 4294901760
    %v284 = vsub.f32 %v71, %v283
    %285 = vmatpush1.xpose.msra.mxu0 %v284
    %286 = vmatprep.subr.mxu0 0.0
    %v287 = vand.u32 %v74, 4294901760
    %v288 = vsub.f32 %v74, %v287
    %289 = vmatpush1.xpose.msra.mxu0 %v288
    %290 = vmatprep.subr.mxu0 0.0
    %291 = vmatpush1.xpose.msra.mxu0 0.0
    %292 = vmatprep.subr.mxu0 0.0
    %293 = vmatpush1.xpose.msra.mxu0 0.0
    %294 = vmatprep.subr.mxu0 0.0
    %295 = vmatpush1.xpose.msra.mxu0 0.0
    %296 = vmatprep.subr.mxu0 0.0
    %297 = vmatpush1.xpose.msra.mxu0 0.0
    %298 = vmatprep.subr.mxu0 0.0
    %299 = vmatpush1.xpose.msra.mxu0 0.0
    %300 = vmatprep.subr.mxu0 0.0
    %301 = vmatpush1.xpose.msra.mxu0 0.0
    %302 = vmatprep.subr.mxu0 0.0
    %303 = vmatpush1.xpose.msra.mxu0 0.0
    %304 = vmatprep.subr.mxu0 0.0
    %305 = vmatpush1.xpose.msra.mxu0 0.0
    %306 = vmatprep.subr.mxu0 0.0
    %307 = vmatpush1.xpose.msra.mxu0 0.0
    %308 = vmatprep.subr.mxu0 0.0
    %309 = vmatpush1.xpose.msra.mxu0 0.0
    %310 = vmatprep.subr.mxu0 0.0
    %311 = vmatpush1.xpose.msra.mxu0 0.0
    %312 = vmatprep.subr.mxu0 0.0
    %313 = vmatpush1.xpose.msra.mxu0 0.0
    %314 = vmatprep.subr.mxu0 0.0
    %315 = vmatpush1.xpose.msra.mxu0 0.0
    %316 = vmatprep.subr.mxu0 0.0
    %317 = vmatpush1.xpose.msra.mxu0 0.0
    %318 = vmatprep.subr.mxu0 0.0
    %319 = vmatpush1.xpose.msra.mxu0 0.0
    %320 = vmatprep.subr.mxu0 0.0
    %321 = vmatpush1.xpose.msra.mxu0 0.0
    %322 = vmatprep.subr.mxu0 0.0
    %323 = vmatpush1.xpose.msra.mxu0 0.0
    %324 = vmatprep.subr.mxu0 0.0
    %325 = vmatpush1.xpose.msra.mxu0 0.0
    %326 = vmatprep.subr.mxu0 0.0
    %327 = vmatpush1.xpose.msra.mxu0 0.0
    %328 = vmatprep.subr.mxu0 0.0
    %329 = vmatpush1.xpose.msra.mxu0 0.0
    %330 = vmatprep.subr.mxu0 0.0
    %331 = vmatpush1.xpose.msra.mxu0 0.0
    %332 = vmatprep.subr.mxu0 0.0
    %333 = vmatpush1.xpose.msra.mxu0 0.0
    %334 = vmatprep.subr.mxu0 0.0
    %335 = vmatpush1.xpose.msra.mxu0 0.0
    %336 = vmatprep.subr.mxu0 0.0
    %337 = vmatpush1.xpose.msra.mxu0 0.0
    %338 = vmatprep.subr.mxu0 0.0
    %339 = vmatpush1.xpose.msra.mxu0 0.0
    %340 = vmatprep.subr.mxu0 0.0
    %341 = vmatpush1.xpose.msra.mxu0 0.0
    %342 = vmatprep.subr.mxu0 0.0
    %343 = vmatpush1.xpose.msra.mxu0 0.0
    %344 = vmatprep.subr.mxu0 0.0
    %345 = vmatpush1.xpose.msra.mxu0 0.0
    %346 = vmatprep.subr.mxu0 0.0
    %347 = vmatpush1.xpose.msra.mxu0 0.0
    %348 = vmatprep.subr.mxu0 0.0
    %349 = vmatpush1.xpose.msra.mxu0 0.0
    %350 = vmatprep.mubr.f32.mxu0 0.0
    %v351 = vand.u32 %v59, 4294901760
    %v352 = vsub.f32 %v59, %v351
    %353 = vmatmul.mubr.f32.gmra.mrb[0].mxu0 %v352
    %v354 = vpop.f32.mrb[0].mxu0
    %v355 = vadd.f32 %v261, %v354
    %v356 = vpop.f32.mrb[0].mxu0
    %357 = vmatprep.mubr.f32.mxu0 0.0
    %v358 = vand.u32 %v62, 4294901760
    %v359 = vsub.f32 %v62, %v358
    %360 = vmatmul.mubr.f32.gmra.mrb[0].mxu0 %v359
    %v361 = vpop.f32.mrb[0].mxu0
    %v362 = vadd.f32 %v267, %v361
    %v363 = vpop.f32.mrb[0].mxu0
    %364 = vmatprep.mubr.f32.mxu0 0.0
    %v365 = vand.u32 %v65, 4294901760
    %v366 = vsub.f32 %v65, %v365
    %367 = vmatmul.mubr.f32.gmra.mrb[0].mxu0 %v366
    %v368 = vpop.f32.mrb[0].mxu0
    %v369 = vadd.f32 %v273, %v368
    %v370 = vpop.f32.mrb[0].mxu0
    %371 = vmatprep.mubr.f32.mxu0 0.0
    %v372 = vand.u32 %v68, 4294901760
    %v373 = vsub.f32 %v68, %v372
    %374 = vmatmul.mubr.f32.gmra.mrb[0].mxu0 %v373
    %v375 = vpop.f32.mrb[0].mxu0
    %v376 = vadd.f32 %v279, %v375
    %v377 = vpop.f32.mrb[0].mxu0
    %378 = vdwg.mxu0
    %379 = vmatprep.subr.mxu0 0.0
    %v380 = vand.u32 %v71, 4294901760
    %381 = vmatpush1.xpose.msra.mxu0 %v380
    %382 = vmatprep.subr.mxu0 0.0
    %v383 = vand.u32 %v74, 4294901760
    %384 = vmatpush1.xpose.msra.mxu0 %v383
    %385 = vmatprep.subr.mxu0 0.0
    %386 = vmatpush1.xpose.msra.mxu0 0.0
    %387 = vmatprep.subr.mxu0 0.0
    %388 = vmatpush1.xpose.msra.mxu0 0.0
    %389 = vmatprep.subr.mxu0 0.0
    %390 = vmatpush1.xpose.msra.mxu0 0.0
    %391 = vmatprep.subr.mxu0 0.0
    %392 = vmatpush1.xpose.msra.mxu0 0.0
    %393 = vmatprep.subr.mxu0 0.0
    %394 = vmatpush1.xpose.msra.mxu0 0.0
    %395 = vmatprep.subr.mxu0 0.0
    %396 = vmatpush1.xpose.msra.mxu0 0.0
    %397 = vmatprep.subr.mxu0 0.0
    %398 = vmatpush1.xpose.msra.mxu0 0.0
    %399 = vmatprep.subr.mxu0 0.0
    %400 = vmatpush1.xpose.msra.mxu0 0.0
    %401 = vmatprep.subr.mxu0 0.0
    %402 = vmatpush1.xpose.msra.mxu0 0.0
    %403 = vmatprep.subr.mxu0 0.0
    %404 = vmatpush1.xpose.msra.mxu0 0.0
    %405 = vmatprep.subr.mxu0 0.0
    %406 = vmatpush1.xpose.msra.mxu0 0.0
    %407 = vmatprep.subr.mxu0 0.0
    %408 = vmatpush1.xpose.msra.mxu0 0.0
    %409 = vmatprep.subr.mxu0 0.0
    %410 = vmatpush1.xpose.msra.mxu0 0.0
    %411 = vmatprep.subr.mxu0 0.0
    %412 = vmatpush1.xpose.msra.mxu0 0.0
    %413 = vmatprep.subr.mxu0 0.0
    %414 = vmatpush1.xpose.msra.mxu0 0.0
    %415 = vmatprep.subr.mxu0 0.0
    %416 = vmatpush1.xpose.msra.mxu0 0.0
    %417 = vmatprep.subr.mxu0 0.0
    %418 = vmatpush1.xpose.msra.mxu0 0.0
    %419 = vmatprep.subr.mxu0 0.0
    %420 = vmatpush1.xpose.msra.mxu0 0.0
    %421 = vmatprep.subr.mxu0 0.0
    %422 = vmatpush1.xpose.msra.mxu0 0.0
    %423 = vmatprep.subr.mxu0 0.0
    %424 = vmatpush1.xpose.msra.mxu0 0.0
    %425 = vmatprep.subr.mxu0 0.0
    %426 = vmatpush1.xpose.msra.mxu0 0.0
    %427 = vmatprep.subr.mxu0 0.0
    %428 = vmatpush1.xpose.msra.mxu0 0.0
    %429 = vmatprep.subr.mxu0 0.0
    %430 = vmatpush1.xpose.msra.mxu0 0.0
    %431 = vmatprep.subr.mxu0 0.0
    %432 = vmatpush1.xpose.msra.mxu0 0.0
    %433 = vmatprep.subr.mxu0 0.0
    %434 = vmatpush1.xpose.msra.mxu0 0.0
    %435 = vmatprep.subr.mxu0 0.0
    %436 = vmatpush1.xpose.msra.mxu0 0.0
    %437 = vmatprep.subr.mxu0 0.0
    %438 = vmatpush1.xpose.msra.mxu0 0.0
    %439 = vmatprep.subr.mxu0 0.0
    %440 = vmatpush1.xpose.msra.mxu0 0.0
    %441 = vmatprep.subr.mxu0 0.0
    %442 = vmatpush1.xpose.msra.mxu0 0.0
    %443 = vmatprep.subr.mxu0 0.0
    %444 = vmatpush1.xpose.msra.mxu0 0.0
    %445 = vmatprep.mubr.f32.mxu0 0.0
    %v446 = vand.u32 %v59, 4294901760
    %v447 = vsub.f32 %v59, %v446
    %v448 = vand.u32 %v447, 4294901760
    %449 = vmatmul.mubr.f32.gmra.mrb[0].mxu0 %v448
    %v450 = vpop.f32.mrb[0].mxu0
    %v451 = vadd.f32 %v355, %v450
    %v452 = vpop.f32.mrb[0].mxu0
    %453 = vmatprep.mubr.f32.mxu0 0.0
    %v454 = vand.u32 %v62, 4294901760
    %v455 = vsub.f32 %v62, %v454
    %v456 = vand.u32 %v455, 4294901760
    %457 = vmatmul.mubr.f32.gmra.mrb[0].mxu0 %v456
    %v458 = vpop.f32.mrb[0].mxu0
    %v459 = vadd.f32 %v362, %v458
    %v460 = vpop.f32.mrb[0].mxu0
    %461 = vmatprep.mubr.f32.mxu0 0.0
    %v462 = vand.u32 %v65, 4294901760
    %v463 = vsub.f32 %v65, %v462
    %v464 = vand.u32 %v463, 4294901760
    %465 = vmatmul.mubr.f32.gmra.mrb[0].mxu0 %v464
    %v466 = vpop.f32.mrb[0].mxu0
    %v467 = vadd.f32 %v369, %v466
    %v468 = vpop.f32.mrb[0].mxu0
    %469 = vmatprep.mubr.f32.mxu0 0.0
    %v470 = vand.u32 %v68, 4294901760
    %v471 = vsub.f32 %v68, %v470
    %v472 = vand.u32 %v471, 4294901760
    %473 = vmatmul.mubr.f32.gmra.mrb[0].mxu0 %v472
    %v474 = vpop.f32.mrb[0].mxu0
    %v475 = vadd.f32 %v376, %v474
    %v476 = vpop.f32.mrb[0].mxu0
    %477 = vdwg.mxu0
    %478 = vmatprep.subr.mxu0 0.0
    %v479 = vand.u32 %v71, 4294901760
    %v480 = vsub.f32 %v71, %v479
    %v481 = vand.u32 %v480, 4294901760
    %482 = vmatpush1.xpose.msra.mxu0 %v481
    %483 = vmatprep.subr.mxu0 0.0
    %v484 = vand.u32 %v74, 4294901760
    %v485 = vsub.f32 %v74, %v484
    %v486 = vand.u32 %v485, 4294901760
    %487 = vmatpush1.xpose.msra.mxu0 %v486
    %488 = vmatprep.subr.mxu0 0.0
    %489 = vmatpush1.xpose.msra.mxu0 0.0
    %490 = vmatprep.subr.mxu0 0.0
    %491 = vmatpush1.xpose.msra.mxu0 0.0
    %492 = vmatprep.subr.mxu0 0.0
    %493 = vmatpush1.xpose.msra.mxu0 0.0
    %494 = vmatprep.subr.mxu0 0.0
    %495 = vmatpush1.xpose.msra.mxu0 0.0
    %496 = vmatprep.subr.mxu0 0.0
    %497 = vmatpush1.xpose.msra.mxu0 0.0
    %498 = vmatprep.subr.mxu0 0.0
    %499 = vmatpush1.xpose.msra.mxu0 0.0
    %500 = vmatprep.subr.mxu0 0.0
    %501 = vmatpush1.xpose.msra.mxu0 0.0
    %502 = vmatprep.subr.mxu0 0.0
    %503 = vmatpush1.xpose.msra.mxu0 0.0
    %504 = vmatprep.subr.mxu0 0.0
    %505 = vmatpush1.xpose.msra.mxu0 0.0
    %506 = vmatprep.subr.mxu0 0.0
    %507 = vmatpush1.xpose.msra.mxu0 0.0
    %508 = vmatprep.subr.mxu0 0.0
    %509 = vmatpush1.xpose.msra.mxu0 0.0
    %510 = vmatprep.subr.mxu0 0.0
    %511 = vmatpush1.xpose.msra.mxu0 0.0
    %512 = vmatprep.subr.mxu0 0.0
    %513 = vmatpush1.xpose.msra.mxu0 0.0
    %514 = vmatprep.subr.mxu0 0.0
    %515 = vmatpush1.xpose.msra.mxu0 0.0
    %516 = vmatprep.subr.mxu0 0.0
    %517 = vmatpush1.xpose.msra.mxu0 0.0
    %518 = vmatprep.subr.mxu0 0.0
    %519 = vmatpush1.xpose.msra.mxu0 0.0
    %520 = vmatprep.subr.mxu0 0.0
    %521 = vmatpush1.xpose.msra.mxu0 0.0
    %522 = vmatprep.subr.mxu0 0.0
    %523 = vmatpush1.xpose.msra.mxu0 0.0
    %524 = vmatprep.subr.mxu0 0.0
    %525 = vmatpush1.xpose.msra.mxu0 0.0
    %526 = vmatprep.subr.mxu0 0.0
    %527 = vmatpush1.xpose.msra.mxu0 0.0
    %528 = vmatprep.subr.mxu0 0.0
    %529 = vmatpush1.xpose.msra.mxu0 0.0
    %530 = vmatprep.subr.mxu0 0.0
    %531 = vmatpush1.xpose.msra.mxu0 0.0
    %532 = vmatprep.subr.mxu0 0.0
    %533 = vmatpush1.xpose.msra.mxu0 0.0
    %534 = vmatprep.subr.mxu0 0.0
    %535 = vmatpush1.xpose.msra.mxu0 0.0
    %536 = vmatprep.subr.mxu0 0.0
    %537 = vmatpush1.xpose.msra.mxu0 0.0
    %538 = vmatprep.subr.mxu0 0.0
    %539 = vmatpush1.xpose.msra.mxu0 0.0
    %540 = vmatprep.subr.mxu0 0.0
    %541 = vmatpush1.xpose.msra.mxu0 0.0
    %542 = vmatprep.subr.mxu0 0.0
    %543 = vmatpush1.xpose.msra.mxu0 0.0
    %544 = vmatprep.subr.mxu0 0.0
    %545 = vmatpush1.xpose.msra.mxu0 0.0
    %546 = vmatprep.subr.mxu0 0.0
    %547 = vmatpush1.xpose.msra.mxu0 0.0
    %548 = vmatprep.mubr.f32.mxu0 0.0
    %v549 = vand.u32 %v59, 4294901760
    %550 = vmatmul.mubr.f32.gmra.mrb[0].mxu0 %v549
    %v551 = vpop.f32.mrb[0].mxu0
    %v552 = vadd.f32 %v451, %v551
    %v553 = vpop.f32.mrb[0].mxu0
    %554 = vmatprep.mubr.f32.mxu0 0.0
    %v555 = vand.u32 %v62, 4294901760
    %556 = vmatmul.mubr.f32.gmra.mrb[0].mxu0 %v555
    %v557 = vpop.f32.mrb[0].mxu0
    %v558 = vadd.f32 %v459, %v557
    %v559 = vpop.f32.mrb[0].mxu0
    %560 = vmatprep.mubr.f32.mxu0 0.0
    %v561 = vand.u32 %v65, 4294901760
    %562 = vmatmul.mubr.f32.gmra.mrb[0].mxu0 %v561
    %v563 = vpop.f32.mrb[0].mxu0
    %v564 = vadd.f32 %v467, %v563
    %v565 = vpop.f32.mrb[0].mxu0
    %566 = vmatprep.mubr.f32.mxu0 0.0
    %v567 = vand.u32 %v68, 4294901760
    %568 = vmatmul.mubr.f32.gmra.mrb[0].mxu0 %v567
    %v569 = vpop.f32.mrb[0].mxu0
    %v570 = vadd.f32 %v475, %v569
    %v571 = vpop.f32.mrb[0].mxu0
    %572 = vdwg.mxu0
    %573 = vmatprep.subr.mxu0 0.0
    %v574 = vand.u32 %v71, 4294901760
    %575 = vmatpush1.xpose.msra.mxu0 %v574
    %576 = vmatprep.subr.mxu0 0.0
    %v577 = vand.u32 %v74, 4294901760
    %578 = vmatpush1.xpose.msra.mxu0 %v577
    %579 = vmatprep.subr.mxu0 0.0
    %580 = vmatpush1.xpose.msra.mxu0 0.0
    %581 = vmatprep.subr.mxu0 0.0
    %582 = vmatpush1.xpose.msra.mxu0 0.0
    %583 = vmatprep.subr.mxu0 0.0
    %584 = vmatpush1.xpose.msra.mxu0 0.0
    %585 = vmatprep.subr.mxu0 0.0
    %586 = vmatpush1.xpose.msra.mxu0 0.0
    %587 = vmatprep.subr.mxu0 0.0
    %588 = vmatpush1.xpose.msra.mxu0 0.0
    %589 = vmatprep.subr.mxu0 0.0
    %590 = vmatpush1.xpose.msra.mxu0 0.0
    %591 = vmatprep.subr.mxu0 0.0
    %592 = vmatpush1.xpose.msra.mxu0 0.0
    %593 = vmatprep.subr.mxu0 0.0
    %594 = vmatpush1.xpose.msra.mxu0 0.0
    %595 = vmatprep.subr.mxu0 0.0
    %596 = vmatpush1.xpose.msra.mxu0 0.0
    %597 = vmatprep.subr.mxu0 0.0
    %598 = vmatpush1.xpose.msra.mxu0 0.0
    %599 = vmatprep.subr.mxu0 0.0
    %600 = vmatpush1.xpose.msra.mxu0 0.0
    %601 = vmatprep.subr.mxu0 0.0
    %602 = vmatpush1.xpose.msra.mxu0 0.0
    %603 = vmatprep.subr.mxu0 0.0
    %604 = vmatpush1.xpose.msra.mxu0 0.0
    %605 = vmatprep.subr.mxu0 0.0
    %606 = vmatpush1.xpose.msra.mxu0 0.0
    %607 = vmatprep.subr.mxu0 0.0
    %608 = vmatpush1.xpose.msra.mxu0 0.0
    %609 = vmatprep.subr.mxu0 0.0
    %610 = vmatpush1.xpose.msra.mxu0 0.0
    %611 = vmatprep.subr.mxu0 0.0
    %612 = vmatpush1.xpose.msra.mxu0 0.0
    %613 = vmatprep.subr.mxu0 0.0
    %614 = vmatpush1.xpose.msra.mxu0 0.0
    %615 = vmatprep.subr.mxu0 0.0
    %616 = vmatpush1.xpose.msra.mxu0 0.0
    %617 = vmatprep.subr.mxu0 0.0
    %618 = vmatpush1.xpose.msra.mxu0 0.0
    %619 = vmatprep.subr.mxu0 0.0
    %620 = vmatpush1.xpose.msra.mxu0 0.0
    %621 = vmatprep.subr.mxu0 0.0
    %622 = vmatpush1.xpose.msra.mxu0 0.0
    %623 = vmatprep.subr.mxu0 0.0
    %624 = vmatpush1.xpose.msra.mxu0 0.0
    %625 = vmatprep.subr.mxu0 0.0
    %626 = vmatpush1.xpose.msra.mxu0 0.0
    %627 = vmatprep.subr.mxu0 0.0
    %628 = vmatpush1.xpose.msra.mxu0 0.0
    %629 = vmatprep.subr.mxu0 0.0
    %630 = vmatpush1.xpose.msra.mxu0 0.0
    %631 = vmatprep.subr.mxu0 0.0
    %632 = vmatpush1.xpose.msra.mxu0 0.0
    %633 = vmatprep.subr.mxu0 0.0
    %634 = vmatpush1.xpose.msra.mxu0 0.0
    %635 = vmatprep.subr.mxu0 0.0
    %636 = vmatpush1.xpose.msra.mxu0 0.0
    %637 = vmatprep.subr.mxu0 0.0
    %638 = vmatpush1.xpose.msra.mxu0 0.0
    %639 = vmatprep.mubr.f32.mxu0 0.0
    %v640 = vand.u32 %v59, 4294901760
    %641 = vmatmul.mubr.f32.gmra.mrb[0].mxu0 %v640
    %v642 = vpop.f32.mrb[0].mxu0
    %v643 = vadd.f32 %v552, %v642
    %v644 = vpop.f32.mrb[0].mxu0
    %645 = vmatprep.mubr.f32.mxu0 0.0
    %v646 = vand.u32 %v62, 4294901760
    %647 = vmatmul.mubr.f32.gmra.mrb[0].mxu0 %v646
    %v648 = vpop.f32.mrb[0].mxu0
    %v649 = vadd.f32 %v558, %v648
    %v650 = vpop.f32.mrb[0].mxu0
    %651 = vmatprep.mubr.f32.mxu0 0.0
    %v652 = vand.u32 %v65, 4294901760
    %653 = vmatmul.mubr.f32.gmra.mrb[0].mxu0 %v652
    %v654 = vpop.f32.mrb[0].mxu0
    %v655 = vadd.f32 %v564, %v654
    %v656 = vpop.f32.mrb[0].mxu0
    %657 = vmatprep.mubr.f32.mxu0 0.0
    %v658 = vand.u32 %v68, 4294901760
    %659 = vmatmul.mubr.f32.gmra.mrb[0].mxu0 %v658
    %v660 = vpop.f32.mrb[0].mxu0
    %v661 = vadd.f32 %v570, %v660
    %v662 = vpop.f32.mrb[0].mxu0
    %663 = vdwg.mxu0
    %v664 = vmax.f32 %v643, 0.0
    %v665 = vmax.f32 %v649, 0.0
    %v666 = vmax.f32 %v655, 0.0
    %v667 = vmax.f32 %v661, 0.0
    %v668 = vld [vmem:[%s3] sm:$0xff]
    %v669 = vld [vmem:[%s3 + $0x8] sm:$0xff]
    %v670 = vld [vmem:[%s3 + $0x10] sm:$0xff]
    %v671 = vld [vmem:[%s3 + $0x18] sm:$0xff]
    %v672 = vld [vmem:[%s4] sm:$0xff]
    %v673 = vld [vmem:[%s4 + $0x8] sm:$0xff]
    %v674 = vld [vmem:[%s4 + $0x10] sm:$0xff]
    %v675 = vld [vmem:[%s4 + $0x18] sm:$0xff]
    %677 = vset.pattern.permute.xlu0 0
    %678 = vperm.xlu0 %677, %v672
    %v679 = vpop.permute.xlu0 %678
    %682 = vset.pattern.permute.xlu0 0
    %683 = vperm.xlu0 %682, %v673
    %v684 = vpop.permute.xlu0 %683
    %687 = vset.pattern.permute.xlu0 0
    %688 = vperm.xlu0 %687, %v674
    %v689 = vpop.permute.xlu0 %688
    %692 = vset.pattern.permute.xlu0 0
    %693 = vperm.xlu0 %692, %v675
    %v694 = vpop.permute.xlu0 %693
    %vm696 = vcmask 261120
    %v698 = vsel %vm696, %v668, 0
    %v701 = vsel %vm696, %v669, 0
    %v704 = vsel %vm696, %v670, 0
    %v707 = vsel %vm696, %v671, 0
    %709 = vmatprep.subr.mxu0 0.0
    %v710 = vand.u32 %v664, 4294901760
    %711 = vmatpush1.msra.mxu0 %v710
    %712 = vmatprep.subr.mxu0 0.0
    %v713 = vand.u32 %v665, 4294901760
    %714 = vmatpush1.msra.mxu0 %v713
    %715 = vmatprep.subr.mxu0 0.0
    %v716 = vand.u32 %v666, 4294901760
    %717 = vmatpush1.msra.mxu0 %v716
    %718 = vmatprep.subr.mxu0 0.0
    %v719 = vand.u32 %v667, 4294901760
    %720 = vmatpush1.msra.mxu0 %v719
    %721 = vmatprep.subr.mxu0 0.0
    %722 = vmatpush1.msra.mxu0 0.0
    %723 = vmatprep.subr.mxu0 0.0
    %724 = vmatpush1.msra.mxu0 0.0
    %725 = vmatprep.subr.mxu0 0.0
    %726 = vmatpush1.msra.mxu0 0.0
    %727 = vmatprep.subr.mxu0 0.0
    %728 = vmatpush1.msra.mxu0 0.0
    %729 = vmatprep.subr.mxu0 0.0
    %730 = vmatpush1.msra.mxu0 0.0
    %731 = vmatprep.subr.mxu0 0.0
    %732 = vmatpush1.msra.mxu0 0.0
    %733 = vmatprep.subr.mxu0 0.0
    %734 = vmatpush1.msra.mxu0 0.0
    %735 = vmatprep.subr.mxu0 0.0
    %736 = vmatpush1.msra.mxu0 0.0
    %737 = vmatprep.subr.mxu0 0.0
    %738 = vmatpush1.msra.mxu0 0.0
    %739 = vmatprep.subr.mxu0 0.0
    %740 = vmatpush1.msra.mxu0 0.0
    %741 = vmatprep.subr.mxu0 0.0
    %742 = vmatpush1.msra.mxu0 0.0
    %743 = vmatprep.subr.mxu0 0.0
    %744 = vmatpush1.msra.mxu0 0.0
    %745 = vmatprep.subr.mxu0 0.0
    %746 = vmatpush1.msra.mxu0 0.0
    %747 = vmatprep.subr.mxu0 0.0
    %748 = vmatpush1.msra.mxu0 0.0
    %749 = vmatprep.subr.mxu0 0.0
    %750 = vmatpush1.msra.mxu0 0.0
    %751 = vmatprep.subr.mxu0 0.0
    %752 = vmatpush1.msra.mxu0 0.0
    %753 = vmatprep.subr.mxu0 0.0
    %754 = vmatpush1.msra.mxu0 0.0
    %755 = vmatprep.subr.mxu0 0.0
    %756 = vmatpush1.msra.mxu0 0.0
    %757 = vmatprep.subr.mxu0 0.0
    %758 = vmatpush1.msra.mxu0 0.0
    %759 = vmatprep.subr.mxu0 0.0
    %760 = vmatpush1.msra.mxu0 0.0
    %761 = vmatprep.subr.mxu0 0.0
    %762 = vmatpush1.msra.mxu0 0.0
    %763 = vmatprep.subr.mxu0 0.0
    %764 = vmatpush1.msra.mxu0 0.0
    %765 = vmatprep.subr.mxu0 0.0
    %766 = vmatpush1.msra.mxu0 0.0
    %767 = vmatprep.subr.mxu0 0.0
    %768 = vmatpush1.msra.mxu0 0.0
    %769 = vmatprep.subr.mxu0 0.0
    %770 = vmatpush1.msra.mxu0 0.0
    %771 = vmatprep.subr.mxu0 0.0
    %772 = vmatpush1.msra.mxu0 0.0
    %773 = vmatprep.subr.mxu0 0.0
    %774 = vmatpush1.msra.mxu0 0.0
    %775 = vmatprep.subr.mxu0 0.0
    %776 = vmatpush1.msra.mxu0 0.0
    %777 = vmatprep.mubr.f32.mxu0 0.0
    %v778 = vand.u32 %v698, 4294901760
    %v779 = vsub.f32 %v698, %v778
    %v780 = vand.u32 %v779, 4294901760
    %v781 = vsub.f32 %v779, %v780
    %v782 = vand.u32 %v781, 4294901760
    %783 = vmatmul.mubr.f32.gmra.mrb[0].mxu0 %v782
    %v784 = vpop.f32.mrb[0].mxu0
    %v785 = vadd.f32 %v679, %v784
    %v786 = vpop.f32.mrb[0].mxu0
    %787 = vmatprep.mubr.f32.mxu0 0.0
    %v788 = vand.u32 %v701, 4294901760
    %v789 = vsub.f32 %v701, %v788
    %v790 = vand.u32 %v789, 4294901760
    %v791 = vsub.f32 %v789, %v790
    %v792 = vand.u32 %v791, 4294901760
    %793 = vmatmul.mubr.f32.gmra.mrb[0].mxu0 %v792
    %v794 = vpop.f32.mrb[0].mxu0
    %v795 = vadd.f32 %v684, %v794
    %v796 = vpop.f32.mrb[0].mxu0
    %797 = vmatprep.mubr.f32.mxu0 0.0
    %v798 = vand.u32 %v704, 4294901760
    %v799 = vsub.f32 %v704, %v798
    %v800 = vand.u32 %v799, 4294901760
    %v801 = vsub.f32 %v799, %v800
    %v802 = vand.u32 %v801, 4294901760
    %803 = vmatmul.mubr.f32.gmra.mrb[0].mxu0 %v802
    %v804 = vpop.f32.mrb[0].mxu0
    %v805 = vadd.f32 %v689, %v804
    %v806 = vpop.f32.mrb[0].mxu0
    %807 = vmatprep.mubr.f32.mxu0 0.0
    %v808 = vand.u32 %v707, 4294901760
    %v809 = vsub.f32 %v707, %v808
    %v810 = vand.u32 %v809, 4294901760
    %v811 = vsub.f32 %v809, %v810
    %v812 = vand.u32 %v811, 4294901760
    %813 = vmatmul.mubr.f32.gmra.mrb[0].mxu0 %v812
    %v814 = vpop.f32.mrb[0].mxu0
    %v815 = vadd.f32 %v694, %v814
    %v816 = vpop.f32.mrb[0].mxu0
    %817 = vdwg.mxu0
    %818 = vmatprep.subr.mxu0 0.0
    %v819 = vand.u32 %v664, 4294901760
    %v820 = vsub.f32 %v664, %v819
    %v821 = vand.u32 %v820, 4294901760
    %v822 = vsub.f32 %v820, %v821
    %v823 = vand.u32 %v822, 4294901760
    %824 = vmatpush1.msra.mxu0 %v823
    %825 = vmatprep.subr.mxu0 0.0
    %v826 = vand.u32 %v665, 4294901760
    %v827 = vsub.f32 %v665, %v826
    %v828 = vand.u32 %v827, 4294901760
    %v829 = vsub.f32 %v827, %v828
    %v830 = vand.u32 %v829, 4294901760
    %831 = vmatpush1.msra.mxu0 %v830
    %832 = vmatprep.subr.mxu0 0.0
    %v833 = vand.u32 %v666, 4294901760
    %v834 = vsub.f32 %v666, %v833
    %v835 = vand.u32 %v834, 4294901760
    %v836 = vsub.f32 %v834, %v835
    %v837 = vand.u32 %v836, 4294901760
    %838 = vmatpush1.msra.mxu0 %v837
    %839 = vmatprep.subr.mxu0 0.0
    %v840 = vand.u32 %v667, 4294901760
    %v841 = vsub.f32 %v667, %v840
    %v842 = vand.u32 %v841, 4294901760
    %v843 = vsub.f32 %v841, %v842
    %v844 = vand.u32 %v843, 4294901760
    %845 = vmatpush1.msra.mxu0 %v844
    %846 = vmatprep.subr.mxu0 0.0
    %847 = vmatpush1.msra.mxu0 0.0
    %848 = vmatprep.subr.mxu0 0.0
    %849 = vmatpush1.msra.mxu0 0.0
    %850 = vmatprep.subr.mxu0 0.0
    %851 = vmatpush1.msra.mxu0 0.0
    %852 = vmatprep.subr.mxu0 0.0
    %853 = vmatpush1.msra.mxu0 0.0
    %854 = vmatprep.subr.mxu0 0.0
    %855 = vmatpush1.msra.mxu0 0.0
    %856 = vmatprep.subr.mxu0 0.0
    %857 = vmatpush1.msra.mxu0 0.0
    %858 = vmatprep.subr.mxu0 0.0
    %859 = vmatpush1.msra.mxu0 0.0
    %860 = vmatprep.subr.mxu0 0.0
    %861 = vmatpush1.msra.mxu0 0.0
    %862 = vmatprep.subr.mxu0 0.0
    %863 = vmatpush1.msra.mxu0 0.0
    %864 = vmatprep.subr.mxu0 0.0
    %865 = vmatpush1.msra.mxu0 0.0
    %866 = vmatprep.subr.mxu0 0.0
    %867 = vmatpush1.msra.mxu0 0.0
    %868 = vmatprep.subr.mxu0 0.0
    %869 = vmatpush1.msra.mxu0 0.0
    %870 = vmatprep.subr.mxu0 0.0
    %871 = vmatpush1.msra.mxu0 0.0
    %872 = vmatprep.subr.mxu0 0.0
    %873 = vmatpush1.msra.mxu0 0.0
    %874 = vmatprep.subr.mxu0 0.0
    %875 = vmatpush1.msra.mxu0 0.0
    %876 = vmatprep.subr.mxu0 0.0
    %877 = vmatpush1.msra.mxu0 0.0
    %878 = vmatprep.subr.mxu0 0.0
    %879 = vmatpush1.msra.mxu0 0.0
    %880 = vmatprep.subr.mxu0 0.0
    %881 = vmatpush1.msra.mxu0 0.0
    %882 = vmatprep.subr.mxu0 0.0
    %883 = vmatpush1.msra.mxu0 0.0
    %884 = vmatprep.subr.mxu0 0.0
    %885 = vmatpush1.msra.mxu0 0.0
    %886 = vmatprep.subr.mxu0 0.0
    %887 = vmatpush1.msra.mxu0 0.0
    %888 = vmatprep.subr.mxu0 0.0
    %889 = vmatpush1.msra.mxu0 0.0
    %890 = vmatprep.subr.mxu0 0.0
    %891 = vmatpush1.msra.mxu0 0.0
    %892 = vmatprep.subr.mxu0 0.0
    %893 = vmatpush1.msra.mxu0 0.0
    %894 = vmatprep.subr.mxu0 0.0
    %895 = vmatpush1.msra.mxu0 0.0
    %896 = vmatprep.subr.mxu0 0.0
    %897 = vmatpush1.msra.mxu0 0.0
    %898 = vmatprep.subr.mxu0 0.0
    %899 = vmatpush1.msra.mxu0 0.0
    %900 = vmatprep.subr.mxu0 0.0
    %901 = vmatpush1.msra.mxu0 0.0
    %902 = vmatprep.mubr.f32.mxu0 0.0
    %v903 = vand.u32 %v698, 4294901760
    %904 = vmatmul.mubr.f32.gmra.mrb[0].mxu0 %v903
    %v905 = vpop.f32.mrb[0].mxu0
    %v906 = vadd.f32 %v785, %v905
    %v907 = vpop.f32.mrb[0].mxu0
    %908 = vmatprep.mubr.f32.mxu0 0.0
    %v909 = vand.u32 %v701, 4294901760
    %910 = vmatmul.mubr.f32.gmra.mrb[0].mxu0 %v909
    %v911 = vpop.f32.mrb[0].mxu0
    %v912 = vadd.f32 %v795, %v911
    %v913 = vpop.f32.mrb[0].mxu0
    %914 = vmatprep.mubr.f32.mxu0 0.0
    %v915 = vand.u32 %v704, 4294901760
    %916 = vmatmul.mubr.f32.gmra.mrb[0].mxu0 %v915
    %v917 = vpop.f32.mrb[0].mxu0
    %v918 = vadd.f32 %v805, %v917
    %v919 = vpop.f32.mrb[0].mxu0
    %920 = vmatprep.mubr.f32.mxu0 0.0
    %v921 = vand.u32 %v707, 4294901760
    %922 = vmatmul.mubr.f32.gmra.mrb[0].mxu0 %v921
    %v923 = vpop.f32.mrb[0].mxu0
    %v924 = vadd.f32 %v815, %v923
    %v925 = vpop.f32.mrb[0].mxu0
    %926 = vdwg.mxu0
    %927 = vmatprep.subr.mxu0 0.0
    %v928 = vand.u32 %v664, 4294901760
    %v929 = vsub.f32 %v664, %v928
    %930 = vmatpush1.msra.mxu0 %v929
    %931 = vmatprep.subr.mxu0 0.0
    %v932 = vand.u32 %v665, 4294901760
    %v933 = vsub.f32 %v665, %v932
    %934 = vmatpush1.msra.mxu0 %v933
    %935 = vmatprep.subr.mxu0 0.0
    %v936 = vand.u32 %v666, 4294901760
    %v937 = vsub.f32 %v666, %v936
    %938 = vmatpush1.msra.mxu0 %v937
    %939 = vmatprep.subr.mxu0 0.0
    %v940 = vand.u32 %v667, 4294901760
    %v941 = vsub.f32 %v667, %v940
    %942 = vmatpush1.msra.mxu0 %v941
    %943 = vmatprep.subr.mxu0 0.0
    %944 = vmatpush1.msra.mxu0 0.0
    %945 = vmatprep.subr.mxu0 0.0
    %946 = vmatpush1.msra.mxu0 0.0
    %947 = vmatprep.subr.mxu0 0.0
    %948 = vmatpush1.msra.mxu0 0.0
    %949 = vmatprep.subr.mxu0 0.0
    %950 = vmatpush1.msra.mxu0 0.0
    %951 = vmatprep.subr.mxu0 0.0
    %952 = vmatpush1.msra.mxu0 0.0
    %953 = vmatprep.subr.mxu0 0.0
    %954 = vmatpush1.msra.mxu0 0.0
    %955 = vmatprep.subr.mxu0 0.0
    %956 = vmatpush1.msra.mxu0 0.0
    %957 = vmatprep.subr.mxu0 0.0
    %958 = vmatpush1.msra.mxu0 0.0
    %959 = vmatprep.subr.mxu0 0.0
    %960 = vmatpush1.msra.mxu0 0.0
    %961 = vmatprep.subr.mxu0 0.0
    %962 = vmatpush1.msra.mxu0 0.0
    %963 = vmatprep.subr.mxu0 0.0
    %964 = vmatpush1.msra.mxu0 0.0
    %965 = vmatprep.subr.mxu0 0.0
    %966 = vmatpush1.msra.mxu0 0.0
    %967 = vmatprep.subr.mxu0 0.0
    %968 = vmatpush1.msra.mxu0 0.0
    %969 = vmatprep.subr.mxu0 0.0
    %970 = vmatpush1.msra.mxu0 0.0
    %971 = vmatprep.subr.mxu0 0.0
    %972 = vmatpush1.msra.mxu0 0.0
    %973 = vmatprep.subr.mxu0 0.0
    %974 = vmatpush1.msra.mxu0 0.0
    %975 = vmatprep.subr.mxu0 0.0
    %976 = vmatpush1.msra.mxu0 0.0
    %977 = vmatprep.subr.mxu0 0.0
    %978 = vmatpush1.msra.mxu0 0.0
    %979 = vmatprep.subr.mxu0 0.0
    %980 = vmatpush1.msra.mxu0 0.0
    %981 = vmatprep.subr.mxu0 0.0
    %982 = vmatpush1.msra.mxu0 0.0
    %983 = vmatprep.subr.mxu0 0.0
    %984 = vmatpush1.msra.mxu0 0.0
    %985 = vmatprep.subr.mxu0 0.0
    %986 = vmatpush1.msra.mxu0 0.0
    %987 = vmatprep.subr.mxu0 0.0
    %988 = vmatpush1.msra.mxu0 0.0
    %989 = vmatprep.subr.mxu0 0.0
    %990 = vmatpush1.msra.mxu0 0.0
    %991 = vmatprep.subr.mxu0 0.0
    %992 = vmatpush1.msra.mxu0 0.0
    %993 = vmatprep.subr.mxu0 0.0
    %994 = vmatpush1.msra.mxu0 0.0
    %995 = vmatprep.subr.mxu0 0.0
    %996 = vmatpush1.msra.mxu0 0.0
    %997 = vmatprep.subr.mxu0 0.0
    %998 = vmatpush1.msra.mxu0 0.0
    %999 = vmatprep.mubr.f32.mxu0 0.0
    %v1000 = vand.u32 %v698, 4294901760
    %v1001 = vsub.f32 %v698, %v1000
    %1002 = vmatmul.mubr.f32.gmra.mrb[0].mxu0 %v1001
    %v1003 = vpop.f32.mrb[0].mxu0
    %v1004 = vadd.f32 %v906, %v1003
    %v1005 = vpop.f32.mrb[0].mxu0
    %1006 = vmatprep.mubr.f32.mxu0 0.0
    %v1007 = vand.u32 %v701, 4294901760
    %v1008 = vsub.f32 %v701, %v1007
    %1009 = vmatmul.mubr.f32.gmra.mrb[0].mxu0 %v1008
    %v1010 = vpop.f32.mrb[0].mxu0
    %v1011 = vadd.f32 %v912, %v1010
    %v1012 = vpop.f32.mrb[0].mxu0
    %1013 = vmatprep.mubr.f32.mxu0 0.0
    %v1014 = vand.u32 %v704, 4294901760
    %v1015 = vsub.f32 %v704, %v1014
    %1016 = vmatmul.mubr.f32.gmra.mrb[0].mxu0 %v1015
    %v1017 = vpop.f32.mrb[0].mxu0
    %v1018 = vadd.f32 %v918, %v1017
    %v1019 = vpop.f32.mrb[0].mxu0
    %1020 = vmatprep.mubr.f32.mxu0 0.0
    %v1021 = vand.u32 %v707, 4294901760
    %v1022 = vsub.f32 %v707, %v1021
    %1023 = vmatmul.mubr.f32.gmra.mrb[0].mxu0 %v1022
    %v1024 = vpop.f32.mrb[0].mxu0
    %v1025 = vadd.f32 %v924, %v1024
    %v1026 = vpop.f32.mrb[0].mxu0
    %1027 = vdwg.mxu0
    %1028 = vmatprep.subr.mxu0 0.0
    %v1029 = vand.u32 %v664, 4294901760
    %1030 = vmatpush1.msra.mxu0 %v1029
    %1031 = vmatprep.subr.mxu0 0.0
    %v1032 = vand.u32 %v665, 4294901760
    %1033 = vmatpush1.msra.mxu0 %v1032
    %1034 = vmatprep.subr.mxu0 0.0
    %v1035 = vand.u32 %v666, 4294901760
    %1036 = vmatpush1.msra.mxu0 %v1035
    %1037 = vmatprep.subr.mxu0 0.0
    %v1038 = vand.u32 %v667, 4294901760
    %1039 = vmatpush1.msra.mxu0 %v1038
    %1040 = vmatprep.subr.mxu0 0.0
    %1041 = vmatpush1.msra.mxu0 0.0
    %1042 = vmatprep.subr.mxu0 0.0
    %1043 = vmatpush1.msra.mxu0 0.0
    %1044 = vmatprep.subr.mxu0 0.0
    %1045 = vmatpush1.msra.mxu0 0.0
    %1046 = vmatprep.subr.mxu0 0.0
    %1047 = vmatpush1.msra.mxu0 0.0
    %1048 = vmatprep.subr.mxu0 0.0
    %1049 = vmatpush1.msra.mxu0 0.0
    %1050 = vmatprep.subr.mxu0 0.0
    %1051 = vmatpush1.msra.mxu0 0.0
    %1052 = vmatprep.subr.mxu0 0.0
    %1053 = vmatpush1.msra.mxu0 0.0
    %1054 = vmatprep.subr.mxu0 0.0
    %1055 = vmatpush1.msra.mxu0 0.0
    %1056 = vmatprep.subr.mxu0 0.0
    %1057 = vmatpush1.msra.mxu0 0.0
    %1058 = vmatprep.subr.mxu0 0.0
    %1059 = vmatpush1.msra.mxu0 0.0
    %1060 = vmatprep.subr.mxu0 0.0
    %1061 = vmatpush1.msra.mxu0 0.0
    %1062 = vmatprep.subr.mxu0 0.0
    %1063 = vmatpush1.msra.mxu0 0.0
    %1064 = vmatprep.subr.mxu0 0.0
    %1065 = vmatpush1.msra.mxu0 0.0
    %1066 = vmatprep.subr.mxu0 0.0
    %1067 = vmatpush1.msra.mxu0 0.0
    %1068 = vmatprep.subr.mxu0 0.0
    %1069 = vmatpush1.msra.mxu0 0.0
    %1070 = vmatprep.subr.mxu0 0.0
    %1071 = vmatpush1.msra.mxu0 0.0
    %1072 = vmatprep.subr.mxu0 0.0
    %1073 = vmatpush1.msra.mxu0 0.0
    %1074 = vmatprep.subr.mxu0 0.0
    %1075 = vmatpush1.msra.mxu0 0.0
    %1076 = vmatprep.subr.mxu0 0.0
    %1077 = vmatpush1.msra.mxu0 0.0
    %1078 = vmatprep.subr.mxu0 0.0
    %1079 = vmatpush1.msra.mxu0 0.0
    %1080 = vmatprep.subr.mxu0 0.0
    %1081 = vmatpush1.msra.mxu0 0.0
    %1082 = vmatprep.subr.mxu0 0.0
    %1083 = vmatpush1.msra.mxu0 0.0
    %1084 = vmatprep.subr.mxu0 0.0
    %1085 = vmatpush1.msra.mxu0 0.0
    %1086 = vmatprep.subr.mxu0 0.0
    %1087 = vmatpush1.msra.mxu0 0.0
    %1088 = vmatprep.subr.mxu0 0.0
    %1089 = vmatpush1.msra.mxu0 0.0
    %1090 = vmatprep.subr.mxu0 0.0
    %1091 = vmatpush1.msra.mxu0 0.0
    %1092 = vmatprep.subr.mxu0 0.0
    %1093 = vmatpush1.msra.mxu0 0.0
    %1094 = vmatprep.subr.mxu0 0.0
    %1095 = vmatpush1.msra.mxu0 0.0
    %1096 = vmatprep.mubr.f32.mxu0 0.0
    %v1097 = vand.u32 %v698, 4294901760
    %v1098 = vsub.f32 %v698, %v1097
    %v1099 = vand.u32 %v1098, 4294901760
    %1100 = vmatmul.mubr.f32.gmra.mrb[0].mxu0 %v1099
    %v1101 = vpop.f32.mrb[0].mxu0
    %v1102 = vadd.f32 %v1004, %v1101
    %v1103 = vpop.f32.mrb[0].mxu0
    %1104 = vmatprep.mubr.f32.mxu0 0.0
    %v1105 = vand.u32 %v701, 4294901760
    %v1106 = vsub.f32 %v701, %v1105
    %v1107 = vand.u32 %v1106, 4294901760
    %1108 = vmatmul.mubr.f32.gmra.mrb[0].mxu0 %v1107
    %v1109 = vpop.f32.mrb[0].mxu0
    %v1110 = vadd.f32 %v1011, %v1109
    %v1111 = vpop.f32.mrb[0].mxu0
    %1112 = vmatprep.mubr.f32.mxu0 0.0
    %v1113 = vand.u32 %v704, 4294901760
    %v1114 = vsub.f32 %v704, %v1113
    %v1115 = vand.u32 %v1114, 4294901760
    %1116 = vmatmul.mubr.f32.gmra.mrb[0].mxu0 %v1115
    %v1117 = vpop.f32.mrb[0].mxu0
    %v1118 = vadd.f32 %v1018, %v1117
    %v1119 = vpop.f32.mrb[0].mxu0
    %1120 = vmatprep.mubr.f32.mxu0 0.0
    %v1121 = vand.u32 %v707, 4294901760
    %v1122 = vsub.f32 %v707, %v1121
    %v1123 = vand.u32 %v1122, 4294901760
    %1124 = vmatmul.mubr.f32.gmra.mrb[0].mxu0 %v1123
    %v1125 = vpop.f32.mrb[0].mxu0
    %v1126 = vadd.f32 %v1025, %v1125
    %v1127 = vpop.f32.mrb[0].mxu0
    %1128 = vdwg.mxu0
    %1129 = vmatprep.subr.mxu0 0.0
    %v1130 = vand.u32 %v664, 4294901760
    %v1131 = vsub.f32 %v664, %v1130
    %v1132 = vand.u32 %v1131, 4294901760
    %1133 = vmatpush1.msra.mxu0 %v1132
    %1134 = vmatprep.subr.mxu0 0.0
    %v1135 = vand.u32 %v665, 4294901760
    %v1136 = vsub.f32 %v665, %v1135
    %v1137 = vand.u32 %v1136, 4294901760
    %1138 = vmatpush1.msra.mxu0 %v1137
    %1139 = vmatprep.subr.mxu0 0.0
    %v1140 = vand.u32 %v666, 4294901760
    %v1141 = vsub.f32 %v666, %v1140
    %v1142 = vand.u32 %v1141, 4294901760
    %1143 = vmatpush1.msra.mxu0 %v1142
    %1144 = vmatprep.subr.mxu0 0.0
    %v1145 = vand.u32 %v667, 4294901760
    %v1146 = vsub.f32 %v667, %v1145
    %v1147 = vand.u32 %v1146, 4294901760
    %1148 = vmatpush1.msra.mxu0 %v1147
    %1149 = vmatprep.subr.mxu0 0.0
    %1150 = vmatpush1.msra.mxu0 0.0
    %1151 = vmatprep.subr.mxu0 0.0
    %1152 = vmatpush1.msra.mxu0 0.0
    %1153 = vmatprep.subr.mxu0 0.0
    %1154 = vmatpush1.msra.mxu0 0.0
    %1155 = vmatprep.subr.mxu0 0.0
    %1156 = vmatpush1.msra.mxu0 0.0
    %1157 = vmatprep.subr.mxu0 0.0
    %1158 = vmatpush1.msra.mxu0 0.0
    %1159 = vmatprep.subr.mxu0 0.0
    %1160 = vmatpush1.msra.mxu0 0.0
    %1161 = vmatprep.subr.mxu0 0.0
    %1162 = vmatpush1.msra.mxu0 0.0
    %1163 = vmatprep.subr.mxu0 0.0
    %1164 = vmatpush1.msra.mxu0 0.0
    %1165 = vmatprep.subr.mxu0 0.0
    %1166 = vmatpush1.msra.mxu0 0.0
    %1167 = vmatprep.subr.mxu0 0.0
    %1168 = vmatpush1.msra.mxu0 0.0
    %1169 = vmatprep.subr.mxu0 0.0
    %1170 = vmatpush1.msra.mxu0 0.0
    %1171 = vmatprep.subr.mxu0 0.0
    %1172 = vmatpush1.msra.mxu0 0.0
    %1173 = vmatprep.subr.mxu0 0.0
    %1174 = vmatpush1.msra.mxu0 0.0
    %1175 = vmatprep.subr.mxu0 0.0
    %1176 = vmatpush1.msra.mxu0 0.0
    %1177 = vmatprep.subr.mxu0 0.0
    %1178 = vmatpush1.msra.mxu0 0.0
    %1179 = vmatprep.subr.mxu0 0.0
    %1180 = vmatpush1.msra.mxu0 0.0
    %1181 = vmatprep.subr.mxu0 0.0
    %1182 = vmatpush1.msra.mxu0 0.0
    %1183 = vmatprep.subr.mxu0 0.0
    %1184 = vmatpush1.msra.mxu0 0.0
    %1185 = vmatprep.subr.mxu0 0.0
    %1186 = vmatpush1.msra.mxu0 0.0
    %1187 = vmatprep.subr.mxu0 0.0
    %1188 = vmatpush1.msra.mxu0 0.0
    %1189 = vmatprep.subr.mxu0 0.0
    %1190 = vmatpush1.msra.mxu0 0.0
    %1191 = vmatprep.subr.mxu0 0.0
    %1192 = vmatpush1.msra.mxu0 0.0
    %1193 = vmatprep.subr.mxu0 0.0
    %1194 = vmatpush1.msra.mxu0 0.0
    %1195 = vmatprep.subr.mxu0 0.0
    %1196 = vmatpush1.msra.mxu0 0.0
    %1197 = vmatprep.subr.mxu0 0.0
    %1198 = vmatpush1.msra.mxu0 0.0
    %1199 = vmatprep.subr.mxu0 0.0
    %1200 = vmatpush1.msra.mxu0 0.0
    %1201 = vmatprep.subr.mxu0 0.0
    %1202 = vmatpush1.msra.mxu0 0.0
    %1203 = vmatprep.subr.mxu0 0.0
    %1204 = vmatpush1.msra.mxu0 0.0
    %1205 = vmatprep.mubr.f32.mxu0 0.0
    %v1206 = vand.u32 %v698, 4294901760
    %1207 = vmatmul.mubr.f32.gmra.mrb[0].mxu0 %v1206
    %v1208 = vpop.f32.mrb[0].mxu0
    %v1209 = vadd.f32 %v1102, %v1208
    %v1210 = vpop.f32.mrb[0].mxu0
    %1211 = vmatprep.mubr.f32.mxu0 0.0
    %v1212 = vand.u32 %v701, 4294901760
    %1213 = vmatmul.mubr.f32.gmra.mrb[0].mxu0 %v1212
    %v1214 = vpop.f32.mrb[0].mxu0
    %v1215 = vadd.f32 %v1110, %v1214
    %v1216 = vpop.f32.mrb[0].mxu0
    %1217 = vmatprep.mubr.f32.mxu0 0.0
    %v1218 = vand.u32 %v704, 4294901760
    %1219 = vmatmul.mubr.f32.gmra.mrb[0].mxu0 %v1218
    %v1220 = vpop.f32.mrb[0].mxu0
    %v1221 = vadd.f32 %v1118, %v1220
    %v1222 = vpop.f32.mrb[0].mxu0
    %1223 = vmatprep.mubr.f32.mxu0 0.0
    %v1224 = vand.u32 %v707, 4294901760
    %1225 = vmatmul.mubr.f32.gmra.mrb[0].mxu0 %v1224
    %v1226 = vpop.f32.mrb[0].mxu0
    %v1227 = vadd.f32 %v1126, %v1226
    %v1228 = vpop.f32.mrb[0].mxu0
    %1229 = vdwg.mxu0
    %1230 = vmatprep.subr.mxu0 0.0
    %v1231 = vand.u32 %v664, 4294901760
    %1232 = vmatpush1.msra.mxu0 %v1231
    %1233 = vmatprep.subr.mxu0 0.0
    %v1234 = vand.u32 %v665, 4294901760
    %1235 = vmatpush1.msra.mxu0 %v1234
    %1236 = vmatprep.subr.mxu0 0.0
    %v1237 = vand.u32 %v666, 4294901760
    %1238 = vmatpush1.msra.mxu0 %v1237
    %1239 = vmatprep.subr.mxu0 0.0
    %v1240 = vand.u32 %v667, 4294901760
    %1241 = vmatpush1.msra.mxu0 %v1240
    %1242 = vmatprep.subr.mxu0 0.0
    %1243 = vmatpush1.msra.mxu0 0.0
    %1244 = vmatprep.subr.mxu0 0.0
    %1245 = vmatpush1.msra.mxu0 0.0
    %1246 = vmatprep.subr.mxu0 0.0
    %1247 = vmatpush1.msra.mxu0 0.0
    %1248 = vmatprep.subr.mxu0 0.0
    %1249 = vmatpush1.msra.mxu0 0.0
    %1250 = vmatprep.subr.mxu0 0.0
    %1251 = vmatpush1.msra.mxu0 0.0
    %1252 = vmatprep.subr.mxu0 0.0
    %1253 = vmatpush1.msra.mxu0 0.0
    %1254 = vmatprep.subr.mxu0 0.0
    %1255 = vmatpush1.msra.mxu0 0.0
    %1256 = vmatprep.subr.mxu0 0.0
    %1257 = vmatpush1.msra.mxu0 0.0
    %1258 = vmatprep.subr.mxu0 0.0
    %1259 = vmatpush1.msra.mxu0 0.0
    %1260 = vmatprep.subr.mxu0 0.0
    %1261 = vmatpush1.msra.mxu0 0.0
    %1262 = vmatprep.subr.mxu0 0.0
    %1263 = vmatpush1.msra.mxu0 0.0
    %1264 = vmatprep.subr.mxu0 0.0
    %1265 = vmatpush1.msra.mxu0 0.0
    %1266 = vmatprep.subr.mxu0 0.0
    %1267 = vmatpush1.msra.mxu0 0.0
    %1268 = vmatprep.subr.mxu0 0.0
    %1269 = vmatpush1.msra.mxu0 0.0
    %1270 = vmatprep.subr.mxu0 0.0
    %1271 = vmatpush1.msra.mxu0 0.0
    %1272 = vmatprep.subr.mxu0 0.0
    %1273 = vmatpush1.msra.mxu0 0.0
    %1274 = vmatprep.subr.mxu0 0.0
    %1275 = vmatpush1.msra.mxu0 0.0
    %1276 = vmatprep.subr.mxu0 0.0
    %1277 = vmatpush1.msra.mxu0 0.0
    %1278 = vmatprep.subr.mxu0 0.0
    %1279 = vmatpush1.msra.mxu0 0.0
    %1280 = vmatprep.subr.mxu0 0.0
    %1281 = vmatpush1.msra.mxu0 0.0
    %1282 = vmatprep.subr.mxu0 0.0
    %1283 = vmatpush1.msra.mxu0 0.0
    %1284 = vmatprep.subr.mxu0 0.0
    %1285 = vmatpush1.msra.mxu0 0.0
    %1286 = vmatprep.subr.mxu0 0.0
    %1287 = vmatpush1.msra.mxu0 0.0
    %1288 = vmatprep.subr.mxu0 0.0
    %1289 = vmatpush1.msra.mxu0 0.0
    %1290 = vmatprep.subr.mxu0 0.0
    %1291 = vmatpush1.msra.mxu0 0.0
    %1292 = vmatprep.subr.mxu0 0.0
    %1293 = vmatpush1.msra.mxu0 0.0
    %1294 = vmatprep.subr.mxu0 0.0
    %1295 = vmatpush1.msra.mxu0 0.0
    %1296 = vmatprep.subr.mxu0 0.0
    %1297 = vmatpush1.msra.mxu0 0.0
    %1298 = vmatprep.mubr.f32.mxu0 0.0
    %v1299 = vand.u32 %v698, 4294901760
    %1300 = vmatmul.mubr.f32.gmra.mrb[0].mxu0 %v1299
    %v1301 = vpop.f32.mrb[0].mxu0
    %v1302 = vadd.f32 %v1209, %v1301
    %v1303 = vpop.f32.mrb[0].mxu0
    %1304 = vmatprep.mubr.f32.mxu0 0.0
    %v1305 = vand.u32 %v701, 4294901760
    %1306 = vmatmul.mubr.f32.gmra.mrb[0].mxu0 %v1305
    %v1307 = vpop.f32.mrb[0].mxu0
    %v1308 = vadd.f32 %v1215, %v1307
    %v1309 = vpop.f32.mrb[0].mxu0
    %1310 = vmatprep.mubr.f32.mxu0 0.0
    %v1311 = vand.u32 %v704, 4294901760
    %1312 = vmatmul.mubr.f32.gmra.mrb[0].mxu0 %v1311
    %v1313 = vpop.f32.mrb[0].mxu0
    %v1314 = vadd.f32 %v1221, %v1313
    %v1315 = vpop.f32.mrb[0].mxu0
    %1316 = vmatprep.mubr.f32.mxu0 0.0
    %v1317 = vand.u32 %v707, 4294901760
    %1318 = vmatmul.mubr.f32.gmra.mrb[0].mxu0 %v1317
    %v1319 = vpop.f32.mrb[0].mxu0
    %v1320 = vadd.f32 %v1227, %v1319
    %v1321 = vpop.f32.mrb[0].mxu0
    %1322 = vdwg.mxu0
    %v1323 = vmax.f32 %v1302, 0.0
    %v1324 = vmax.f32 %v1308, 0.0
    %v1325 = vmax.f32 %v1314, 0.0
    %v1326 = vmax.f32 %v1320, 0.0
    %v1327 = vld [vmem:[%s5] sm:$0xff]
    %v1328 = vld [vmem:[%s6] sm:$0xff]
    %1330 = vset.pattern.permute.xlu0 0
    %1331 = vperm.xlu0 %1330, %v1328
    %v1332 = vpop.permute.xlu0 %1331
    %v1335 = vsel %vm696, %v1327, 0
    %1337 = vmatprep.subr.mxu0 0.0
    %v1338 = vand.u32 %v1323, 4294901760
    %1339 = vmatpush1.msra.mxu0 %v1338
    %1340 = vmatprep.subr.mxu0 0.0
    %v1341 = vand.u32 %v1324, 4294901760
    %1342 = vmatpush1.msra.mxu0 %v1341
    %1343 = vmatprep.subr.mxu0 0.0
    %v1344 = vand.u32 %v1325, 4294901760
    %1345 = vmatpush1.msra.mxu0 %v1344
    %1346 = vmatprep.subr.mxu0 0.0
    %v1347 = vand.u32 %v1326, 4294901760
    %1348 = vmatpush1.msra.mxu0 %v1347
    %1349 = vmatprep.subr.mxu0 0.0
    %1350 = vmatpush1.msra.mxu0 0.0
    %1351 = vmatprep.subr.mxu0 0.0
    %1352 = vmatpush1.msra.mxu0 0.0
    %1353 = vmatprep.subr.mxu0 0.0
    %1354 = vmatpush1.msra.mxu0 0.0
    %1355 = vmatprep.subr.mxu0 0.0
    %1356 = vmatpush1.msra.mxu0 0.0
    %1357 = vmatprep.subr.mxu0 0.0
    %1358 = vmatpush1.msra.mxu0 0.0
    %1359 = vmatprep.subr.mxu0 0.0
    %1360 = vmatpush1.msra.mxu0 0.0
    %1361 = vmatprep.subr.mxu0 0.0
    %1362 = vmatpush1.msra.mxu0 0.0
    %1363 = vmatprep.subr.mxu0 0.0
    %1364 = vmatpush1.msra.mxu0 0.0
    %1365 = vmatprep.subr.mxu0 0.0
    %1366 = vmatpush1.msra.mxu0 0.0
    %1367 = vmatprep.subr.mxu0 0.0
    %1368 = vmatpush1.msra.mxu0 0.0
    %1369 = vmatprep.subr.mxu0 0.0
    %1370 = vmatpush1.msra.mxu0 0.0
    %1371 = vmatprep.subr.mxu0 0.0
    %1372 = vmatpush1.msra.mxu0 0.0
    %1373 = vmatprep.subr.mxu0 0.0
    %1374 = vmatpush1.msra.mxu0 0.0
    %1375 = vmatprep.subr.mxu0 0.0
    %1376 = vmatpush1.msra.mxu0 0.0
    %1377 = vmatprep.subr.mxu0 0.0
    %1378 = vmatpush1.msra.mxu0 0.0
    %1379 = vmatprep.subr.mxu0 0.0
    %1380 = vmatpush1.msra.mxu0 0.0
    %1381 = vmatprep.subr.mxu0 0.0
    %1382 = vmatpush1.msra.mxu0 0.0
    %1383 = vmatprep.subr.mxu0 0.0
    %1384 = vmatpush1.msra.mxu0 0.0
    %1385 = vmatprep.subr.mxu0 0.0
    %1386 = vmatpush1.msra.mxu0 0.0
    %1387 = vmatprep.subr.mxu0 0.0
    %1388 = vmatpush1.msra.mxu0 0.0
    %1389 = vmatprep.subr.mxu0 0.0
    %1390 = vmatpush1.msra.mxu0 0.0
    %1391 = vmatprep.subr.mxu0 0.0
    %1392 = vmatpush1.msra.mxu0 0.0
    %1393 = vmatprep.subr.mxu0 0.0
    %1394 = vmatpush1.msra.mxu0 0.0
    %1395 = vmatprep.subr.mxu0 0.0
    %1396 = vmatpush1.msra.mxu0 0.0
    %1397 = vmatprep.subr.mxu0 0.0
    %1398 = vmatpush1.msra.mxu0 0.0
    %1399 = vmatprep.subr.mxu0 0.0
    %1400 = vmatpush1.msra.mxu0 0.0
    %1401 = vmatprep.subr.mxu0 0.0
    %1402 = vmatpush1.msra.mxu0 0.0
    %1403 = vmatprep.subr.mxu0 0.0
    %1404 = vmatpush1.msra.mxu0 0.0
    %1405 = vmatprep.mubr.f32.mxu0 0.0
    %v1406 = vand.u32 %v1335, 4294901760
    %v1407 = vsub.f32 %v1335, %v1406
    %v1408 = vand.u32 %v1407, 4294901760
    %v1409 = vsub.f32 %v1407, %v1408
    %v1410 = vand.u32 %v1409, 4294901760
    %1411 = vmatmul.mubr.f32.gmra.mrb[0].mxu0 %v1410
    %v1412 = vpop.f32.mrb[0].mxu0
    %v1413 = vadd.f32 %v1332, %v1412
    %v1414 = vpop.f32.mrb[0].mxu0
    %1415 = vdwg.mxu0
    %1416 = vmatprep.subr.mxu0 0.0
    %v1417 = vand.u32 %v1323, 4294901760
    %v1418 = vsub.f32 %v1323, %v1417
    %v1419 = vand.u32 %v1418, 4294901760
    %v1420 = vsub.f32 %v1418, %v1419
    %v1421 = vand.u32 %v1420, 4294901760
    %1422 = vmatpush1.msra.mxu0 %v1421
    %1423 = vmatprep.subr.mxu0 0.0
    %v1424 = vand.u32 %v1324, 4294901760
    %v1425 = vsub.f32 %v1324, %v1424
    %v1426 = vand.u32 %v1425, 4294901760
    %v1427 = vsub.f32 %v1425, %v1426
    %v1428 = vand.u32 %v1427, 4294901760
    %1429 = vmatpush1.msra.mxu0 %v1428
    %1430 = vmatprep.subr.mxu0 0.0
    %v1431 = vand.u32 %v1325, 4294901760
    %v1432 = vsub.f32 %v1325, %v1431
    %v1433 = vand.u32 %v1432, 4294901760
    %v1434 = vsub.f32 %v1432, %v1433
    %v1435 = vand.u32 %v1434, 4294901760
    %1436 = vmatpush1.msra.mxu0 %v1435
    %1437 = vmatprep.subr.mxu0 0.0
    %v1438 = vand.u32 %v1326, 4294901760
    %v1439 = vsub.f32 %v1326, %v1438
    %v1440 = vand.u32 %v1439, 4294901760
    %v1441 = vsub.f32 %v1439, %v1440
    %v1442 = vand.u32 %v1441, 4294901760
    %1443 = vmatpush1.msra.mxu0 %v1442
    %1444 = vmatprep.subr.mxu0 0.0
    %1445 = vmatpush1.msra.mxu0 0.0
    %1446 = vmatprep.subr.mxu0 0.0
    %1447 = vmatpush1.msra.mxu0 0.0
    %1448 = vmatprep.subr.mxu0 0.0
    %1449 = vmatpush1.msra.mxu0 0.0
    %1450 = vmatprep.subr.mxu0 0.0
    %1451 = vmatpush1.msra.mxu0 0.0
    %1452 = vmatprep.subr.mxu0 0.0
    %1453 = vmatpush1.msra.mxu0 0.0
    %1454 = vmatprep.subr.mxu0 0.0
    %1455 = vmatpush1.msra.mxu0 0.0
    %1456 = vmatprep.subr.mxu0 0.0
    %1457 = vmatpush1.msra.mxu0 0.0
    %1458 = vmatprep.subr.mxu0 0.0
    %1459 = vmatpush1.msra.mxu0 0.0
    %1460 = vmatprep.subr.mxu0 0.0
    %1461 = vmatpush1.msra.mxu0 0.0
    %1462 = vmatprep.subr.mxu0 0.0
    %1463 = vmatpush1.msra.mxu0 0.0
    %1464 = vmatprep.subr.mxu0 0.0
    %1465 = vmatpush1.msra.mxu0 0.0
    %1466 = vmatprep.subr.mxu0 0.0
    %1467 = vmatpush1.msra.mxu0 0.0
    %1468 = vmatprep.subr.mxu0 0.0
    %1469 = vmatpush1.msra.mxu0 0.0
    %1470 = vmatprep.subr.mxu0 0.0
    %1471 = vmatpush1.msra.mxu0 0.0
    %1472 = vmatprep.subr.mxu0 0.0
    %1473 = vmatpush1.msra.mxu0 0.0
    %1474 = vmatprep.subr.mxu0 0.0
    %1475 = vmatpush1.msra.mxu0 0.0
    %1476 = vmatprep.subr.mxu0 0.0
    %1477 = vmatpush1.msra.mxu0 0.0
    %1478 = vmatprep.subr.mxu0 0.0
    %1479 = vmatpush1.msra.mxu0 0.0
    %1480 = vmatprep.subr.mxu0 0.0
    %1481 = vmatpush1.msra.mxu0 0.0
    %1482 = vmatprep.subr.mxu0 0.0
    %1483 = vmatpush1.msra.mxu0 0.0
    %1484 = vmatprep.subr.mxu0 0.0
    %1485 = vmatpush1.msra.mxu0 0.0
    %1486 = vmatprep.subr.mxu0 0.0
    %1487 = vmatpush1.msra.mxu0 0.0
    %1488 = vmatprep.subr.mxu0 0.0
    %1489 = vmatpush1.msra.mxu0 0.0
    %1490 = vmatprep.subr.mxu0 0.0
    %1491 = vmatpush1.msra.mxu0 0.0
    %1492 = vmatprep.subr.mxu0 0.0
    %1493 = vmatpush1.msra.mxu0 0.0
    %1494 = vmatprep.subr.mxu0 0.0
    %1495 = vmatpush1.msra.mxu0 0.0
    %1496 = vmatprep.subr.mxu0 0.0
    %1497 = vmatpush1.msra.mxu0 0.0
    %1498 = vmatprep.subr.mxu0 0.0
    %1499 = vmatpush1.msra.mxu0 0.0
    %1500 = vmatprep.mubr.f32.mxu0 0.0
    %v1501 = vand.u32 %v1335, 4294901760
    %1502 = vmatmul.mubr.f32.gmra.mrb[0].mxu0 %v1501
    %v1503 = vpop.f32.mrb[0].mxu0
    %v1504 = vadd.f32 %v1413, %v1503
    %v1505 = vpop.f32.mrb[0].mxu0
    %1506 = vdwg.mxu0
    %1507 = vmatprep.subr.mxu0 0.0
    %v1508 = vand.u32 %v1323, 4294901760
    %v1509 = vsub.f32 %v1323, %v1508
    %1510 = vmatpush1.msra.mxu0 %v1509
    %1511 = vmatprep.subr.mxu0 0.0
    %v1512 = vand.u32 %v1324, 4294901760
    %v1513 = vsub.f32 %v1324, %v1512
    %1514 = vmatpush1.msra.mxu0 %v1513
    %1515 = vmatprep.subr.mxu0 0.0
    %v1516 = vand.u32 %v1325, 4294901760
    %v1517 = vsub.f32 %v1325, %v1516
    %1518 = vmatpush1.msra.mxu0 %v1517
    %1519 = vmatprep.subr.mxu0 0.0
    %v1520 = vand.u32 %v1326, 4294901760
    %v1521 = vsub.f32 %v1326, %v1520
    %1522 = vmatpush1.msra.mxu0 %v1521
    %1523 = vmatprep.subr.mxu0 0.0
    %1524 = vmatpush1.msra.mxu0 0.0
    %1525 = vmatprep.subr.mxu0 0.0
    %1526 = vmatpush1.msra.mxu0 0.0
    %1527 = vmatprep.subr.mxu0 0.0
    %1528 = vmatpush1.msra.mxu0 0.0
    %1529 = vmatprep.subr.mxu0 0.0
    %1530 = vmatpush1.msra.mxu0 0.0
    %1531 = vmatprep.subr.mxu0 0.0
    %1532 = vmatpush1.msra.mxu0 0.0
    %1533 = vmatprep.subr.mxu0 0.0
    %1534 = vmatpush1.msra.mxu0 0.0
    %1535 = vmatprep.subr.mxu0 0.0
    %1536 = vmatpush1.msra.mxu0 0.0
    %1537 = vmatprep.subr.mxu0 0.0
    %1538 = vmatpush1.msra.mxu0 0.0
    %1539 = vmatprep.subr.mxu0 0.0
    %1540 = vmatpush1.msra.mxu0 0.0
    %1541 = vmatprep.subr.mxu0 0.0
    %1542 = vmatpush1.msra.mxu0 0.0
    %1543 = vmatprep.subr.mxu0 0.0
    %1544 = vmatpush1.msra.mxu0 0.0
    %1545 = vmatprep.subr.mxu0 0.0
    %1546 = vmatpush1.msra.mxu0 0.0
    %1547 = vmatprep.subr.mxu0 0.0
    %1548 = vmatpush1.msra.mxu0 0.0
    %1549 = vmatprep.subr.mxu0 0.0
    %1550 = vmatpush1.msra.mxu0 0.0
    %1551 = vmatprep.subr.mxu0 0.0
    %1552 = vmatpush1.msra.mxu0 0.0
    %1553 = vmatprep.subr.mxu0 0.0
    %1554 = vmatpush1.msra.mxu0 0.0
    %1555 = vmatprep.subr.mxu0 0.0
    %1556 = vmatpush1.msra.mxu0 0.0
    %1557 = vmatprep.subr.mxu0 0.0
    %1558 = vmatpush1.msra.mxu0 0.0
    %1559 = vmatprep.subr.mxu0 0.0
    %1560 = vmatpush1.msra.mxu0 0.0
    %1561 = vmatprep.subr.mxu0 0.0
    %1562 = vmatpush1.msra.mxu0 0.0
    %1563 = vmatprep.subr.mxu0 0.0
    %1564 = vmatpush1.msra.mxu0 0.0
    %1565 = vmatprep.subr.mxu0 0.0
    %1566 = vmatpush1.msra.mxu0 0.0
    %1567 = vmatprep.subr.mxu0 0.0
    %1568 = vmatpush1.msra.mxu0 0.0
    %1569 = vmatprep.subr.mxu0 0.0
    %1570 = vmatpush1.msra.mxu0 0.0
    %1571 = vmatprep.subr.mxu0 0.0
    %1572 = vmatpush1.msra.mxu0 0.0
    %1573 = vmatprep.subr.mxu0 0.0
    %1574 = vmatpush1.msra.mxu0 0.0
    %1575 = vmatprep.subr.mxu0 0.0
    %1576 = vmatpush1.msra.mxu0 0.0
    %1577 = vmatprep.subr.mxu0 0.0
    %1578 = vmatpush1.msra.mxu0 0.0
    %1579 = vmatprep.mubr.f32.mxu0 0.0
    %v1580 = vand.u32 %v1335, 4294901760
    %v1581 = vsub.f32 %v1335, %v1580
    %1582 = vmatmul.mubr.f32.gmra.mrb[0].mxu0 %v1581
    %v1583 = vpop.f32.mrb[0].mxu0
    %v1584 = vadd.f32 %v1504, %v1583
    %v1585 = vpop.f32.mrb[0].mxu0
    %1586 = vdwg.mxu0
    %1587 = vmatprep.subr.mxu0 0.0
    %v1588 = vand.u32 %v1323, 4294901760
    %1589 = vmatpush1.msra.mxu0 %v1588
    %1590 = vmatprep.subr.mxu0 0.0
    %v1591 = vand.u32 %v1324, 4294901760
    %1592 = vmatpush1.msra.mxu0 %v1591
    %1593 = vmatprep.subr.mxu0 0.0
    %v1594 = vand.u32 %v1325, 4294901760
    %1595 = vmatpush1.msra.mxu0 %v1594
    %1596 = vmatprep.subr.mxu0 0.0
    %v1597 = vand.u32 %v1326, 4294901760
    %1598 = vmatpush1.msra.mxu0 %v1597
    %1599 = vmatprep.subr.mxu0 0.0
    %1600 = vmatpush1.msra.mxu0 0.0
    %1601 = vmatprep.subr.mxu0 0.0
    %1602 = vmatpush1.msra.mxu0 0.0
    %1603 = vmatprep.subr.mxu0 0.0
    %1604 = vmatpush1.msra.mxu0 0.0
    %1605 = vmatprep.subr.mxu0 0.0
    %1606 = vmatpush1.msra.mxu0 0.0
    %1607 = vmatprep.subr.mxu0 0.0
    %1608 = vmatpush1.msra.mxu0 0.0
    %1609 = vmatprep.subr.mxu0 0.0
    %1610 = vmatpush1.msra.mxu0 0.0
    %1611 = vmatprep.subr.mxu0 0.0
    %1612 = vmatpush1.msra.mxu0 0.0
    %1613 = vmatprep.subr.mxu0 0.0
    %1614 = vmatpush1.msra.mxu0 0.0
    %1615 = vmatprep.subr.mxu0 0.0
    %1616 = vmatpush1.msra.mxu0 0.0
    %1617 = vmatprep.subr.mxu0 0.0
    %1618 = vmatpush1.msra.mxu0 0.0
    %1619 = vmatprep.subr.mxu0 0.0
    %1620 = vmatpush1.msra.mxu0 0.0
    %1621 = vmatprep.subr.mxu0 0.0
    %1622 = vmatpush1.msra.mxu0 0.0
    %1623 = vmatprep.subr.mxu0 0.0
    %1624 = vmatpush1.msra.mxu0 0.0
    %1625 = vmatprep.subr.mxu0 0.0
    %1626 = vmatpush1.msra.mxu0 0.0
    %1627 = vmatprep.subr.mxu0 0.0
    %1628 = vmatpush1.msra.mxu0 0.0
    %1629 = vmatprep.subr.mxu0 0.0
    %1630 = vmatpush1.msra.mxu0 0.0
    %1631 = vmatprep.subr.mxu0 0.0
    %1632 = vmatpush1.msra.mxu0 0.0
    %1633 = vmatprep.subr.mxu0 0.0
    %1634 = vmatpush1.msra.mxu0 0.0
    %1635 = vmatprep.subr.mxu0 0.0
    %1636 = vmatpush1.msra.mxu0 0.0
    %1637 = vmatprep.subr.mxu0 0.0
    %1638 = vmatpush1.msra.mxu0 0.0
    %1639 = vmatprep.subr.mxu0 0.0
    %1640 = vmatpush1.msra.mxu0 0.0
    %1641 = vmatprep.subr.mxu0 0.0
    %1642 = vmatpush1.msra.mxu0 0.0
    %1643 = vmatprep.subr.mxu0 0.0
    %1644 = vmatpush1.msra.mxu0 0.0
    %1645 = vmatprep.subr.mxu0 0.0
    %1646 = vmatpush1.msra.mxu0 0.0
    %1647 = vmatprep.subr.mxu0 0.0
    %1648 = vmatpush1.msra.mxu0 0.0
    %1649 = vmatprep.subr.mxu0 0.0
    %1650 = vmatpush1.msra.mxu0 0.0
    %1651 = vmatprep.subr.mxu0 0.0
    %1652 = vmatpush1.msra.mxu0 0.0
    %1653 = vmatprep.subr.mxu0 0.0
    %1654 = vmatpush1.msra.mxu0 0.0
    %1655 = vmatprep.mubr.f32.mxu0 0.0
    %v1656 = vand.u32 %v1335, 4294901760
    %v1657 = vsub.f32 %v1335, %v1656
    %v1658 = vand.u32 %v1657, 4294901760
    %1659 = vmatmul.mubr.f32.gmra.mrb[0].mxu0 %v1658
    %v1660 = vpop.f32.mrb[0].mxu0
    %v1661 = vadd.f32 %v1584, %v1660
    %v1662 = vpop.f32.mrb[0].mxu0
    %1663 = vdwg.mxu0
    %1664 = vmatprep.subr.mxu0 0.0
    %v1665 = vand.u32 %v1323, 4294901760
    %v1666 = vsub.f32 %v1323, %v1665
    %v1667 = vand.u32 %v1666, 4294901760
    %1668 = vmatpush1.msra.mxu0 %v1667
    %1669 = vmatprep.subr.mxu0 0.0
    %v1670 = vand.u32 %v1324, 4294901760
    %v1671 = vsub.f32 %v1324, %v1670
    %v1672 = vand.u32 %v1671, 4294901760
    %1673 = vmatpush1.msra.mxu0 %v1672
    %1674 = vmatprep.subr.mxu0 0.0
    %v1675 = vand.u32 %v1325, 4294901760
    %v1676 = vsub.f32 %v1325, %v1675
    %v1677 = vand.u32 %v1676, 4294901760
    %1678 = vmatpush1.msra.mxu0 %v1677
    %1679 = vmatprep.subr.mxu0 0.0
    %v1680 = vand.u32 %v1326, 4294901760
    %v1681 = vsub.f32 %v1326, %v1680
    %v1682 = vand.u32 %v1681, 4294901760
    %1683 = vmatpush1.msra.mxu0 %v1682
    %1684 = vmatprep.subr.mxu0 0.0
    %1685 = vmatpush1.msra.mxu0 0.0
    %1686 = vmatprep.subr.mxu0 0.0
    %1687 = vmatpush1.msra.mxu0 0.0
    %1688 = vmatprep.subr.mxu0 0.0
    %1689 = vmatpush1.msra.mxu0 0.0
    %1690 = vmatprep.subr.mxu0 0.0
    %1691 = vmatpush1.msra.mxu0 0.0
    %1692 = vmatprep.subr.mxu0 0.0
    %1693 = vmatpush1.msra.mxu0 0.0
    %1694 = vmatprep.subr.mxu0 0.0
    %1695 = vmatpush1.msra.mxu0 0.0
    %1696 = vmatprep.subr.mxu0 0.0
    %1697 = vmatpush1.msra.mxu0 0.0
    %1698 = vmatprep.subr.mxu0 0.0
    %1699 = vmatpush1.msra.mxu0 0.0
    %1700 = vmatprep.subr.mxu0 0.0
    %1701 = vmatpush1.msra.mxu0 0.0
    %1702 = vmatprep.subr.mxu0 0.0
    %1703 = vmatpush1.msra.mxu0 0.0
    %1704 = vmatprep.subr.mxu0 0.0
    %1705 = vmatpush1.msra.mxu0 0.0
    %1706 = vmatprep.subr.mxu0 0.0
    %1707 = vmatpush1.msra.mxu0 0.0
    %1708 = vmatprep.subr.mxu0 0.0
    %1709 = vmatpush1.msra.mxu0 0.0
    %1710 = vmatprep.subr.mxu0 0.0
    %1711 = vmatpush1.msra.mxu0 0.0
    %1712 = vmatprep.subr.mxu0 0.0
    %1713 = vmatpush1.msra.mxu0 0.0
    %1714 = vmatprep.subr.mxu0 0.0
    %1715 = vmatpush1.msra.mxu0 0.0
    %1716 = vmatprep.subr.mxu0 0.0
    %1717 = vmatpush1.msra.mxu0 0.0
    %1718 = vmatprep.subr.mxu0 0.0
    %1719 = vmatpush1.msra.mxu0 0.0
    %1720 = vmatprep.subr.mxu0 0.0
    %1721 = vmatpush1.msra.mxu0 0.0
    %1722 = vmatprep.subr.mxu0 0.0
    %1723 = vmatpush1.msra.mxu0 0.0
    %1724 = vmatprep.subr.mxu0 0.0
    %1725 = vmatpush1.msra.mxu0 0.0
    %1726 = vmatprep.subr.mxu0 0.0
    %1727 = vmatpush1.msra.mxu0 0.0
    %1728 = vmatprep.subr.mxu0 0.0
    %1729 = vmatpush1.msra.mxu0 0.0
    %1730 = vmatprep.subr.mxu0 0.0
    %1731 = vmatpush1.msra.mxu0 0.0
    %1732 = vmatprep.subr.mxu0 0.0
    %1733 = vmatpush1.msra.mxu0 0.0
    %1734 = vmatprep.subr.mxu0 0.0
    %1735 = vmatpush1.msra.mxu0 0.0
    %1736 = vmatprep.subr.mxu0 0.0
    %1737 = vmatpush1.msra.mxu0 0.0
    %1738 = vmatprep.subr.mxu0 0.0
    %1739 = vmatpush1.msra.mxu0 0.0
    %1740 = vmatprep.mubr.f32.mxu0 0.0
    %v1741 = vand.u32 %v1335, 4294901760
    %1742 = vmatmul.mubr.f32.gmra.mrb[0].mxu0 %v1741
    %v1743 = vpop.f32.mrb[0].mxu0
    %v1744 = vadd.f32 %v1661, %v1743
    %v1745 = vpop.f32.mrb[0].mxu0
    %1746 = vdwg.mxu0
    %1747 = vmatprep.subr.mxu0 0.0
    %v1748 = vand.u32 %v1323, 4294901760
    %1749 = vmatpush1.msra.mxu0 %v1748
    %1750 = vmatprep.subr.mxu0 0.0
    %v1751 = vand.u32 %v1324, 4294901760
    %1752 = vmatpush1.msra.mxu0 %v1751
    %1753 = vmatprep.subr.mxu0 0.0
    %v1754 = vand.u32 %v1325, 4294901760
    %1755 = vmatpush1.msra.mxu0 %v1754
    %1756 = vmatprep.subr.mxu0 0.0
    %v1757 = vand.u32 %v1326, 4294901760
    %1758 = vmatpush1.msra.mxu0 %v1757
    %1759 = vmatprep.subr.mxu0 0.0
    %1760 = vmatpush1.msra.mxu0 0.0
    %1761 = vmatprep.subr.mxu0 0.0
    %1762 = vmatpush1.msra.mxu0 0.0
    %1763 = vmatprep.subr.mxu0 0.0
    %1764 = vmatpush1.msra.mxu0 0.0
    %1765 = vmatprep.subr.mxu0 0.0
    %1766 = vmatpush1.msra.mxu0 0.0
    %1767 = vmatprep.subr.mxu0 0.0
    %1768 = vmatpush1.msra.mxu0 0.0
    %1769 = vmatprep.subr.mxu0 0.0
    %1770 = vmatpush1.msra.mxu0 0.0
    %1771 = vmatprep.subr.mxu0 0.0
    %1772 = vmatpush1.msra.mxu0 0.0
    %1773 = vmatprep.subr.mxu0 0.0
    %1774 = vmatpush1.msra.mxu0 0.0
    %1775 = vmatprep.subr.mxu0 0.0
    %1776 = vmatpush1.msra.mxu0 0.0
    %1777 = vmatprep.subr.mxu0 0.0
    %1778 = vmatpush1.msra.mxu0 0.0
    %1779 = vmatprep.subr.mxu0 0.0
    %1780 = vmatpush1.msra.mxu0 0.0
    %1781 = vmatprep.subr.mxu0 0.0
    %1782 = vmatpush1.msra.mxu0 0.0
    %1783 = vmatprep.subr.mxu0 0.0
    %1784 = vmatpush1.msra.mxu0 0.0
    %1785 = vmatprep.subr.mxu0 0.0
    %1786 = vmatpush1.msra.mxu0 0.0
    %1787 = vmatprep.subr.mxu0 0.0
    %1788 = vmatpush1.msra.mxu0 0.0
    %1789 = vmatprep.subr.mxu0 0.0
    %1790 = vmatpush1.msra.mxu0 0.0
    %1791 = vmatprep.subr.mxu0 0.0
    %1792 = vmatpush1.msra.mxu0 0.0
    %1793 = vmatprep.subr.mxu0 0.0
    %1794 = vmatpush1.msra.mxu0 0.0
    %1795 = vmatprep.subr.mxu0 0.0
    %1796 = vmatpush1.msra.mxu0 0.0
    %1797 = vmatprep.subr.mxu0 0.0
    %1798 = vmatpush1.msra.mxu0 0.0
    %1799 = vmatprep.subr.mxu0 0.0
    %1800 = vmatpush1.msra.mxu0 0.0
    %1801 = vmatprep.subr.mxu0 0.0
    %1802 = vmatpush1.msra.mxu0 0.0
    %1803 = vmatprep.subr.mxu0 0.0
    %1804 = vmatpush1.msra.mxu0 0.0
    %1805 = vmatprep.subr.mxu0 0.0
    %1806 = vmatpush1.msra.mxu0 0.0
    %1807 = vmatprep.subr.mxu0 0.0
    %1808 = vmatpush1.msra.mxu0 0.0
    %1809 = vmatprep.subr.mxu0 0.0
    %1810 = vmatpush1.msra.mxu0 0.0
    %1811 = vmatprep.subr.mxu0 0.0
    %1812 = vmatpush1.msra.mxu0 0.0
    %1813 = vmatprep.subr.mxu0 0.0
    %1814 = vmatpush1.msra.mxu0 0.0
    %1815 = vmatprep.mubr.f32.mxu0 0.0
    %v1816 = vand.u32 %v1335, 4294901760
    %1817 = vmatmul.mubr.f32.gmra.mrb[0].mxu0 %v1816
    %v1818 = vpop.f32.mrb[0].mxu0
    %v1819 = vadd.f32 %v1744, %v1818
    %v1820 = vpop.f32.mrb[0].mxu0
    %1821 = vdwg.mxu0
    %1822 = vst.msk [vmem:[#allocation2] sm:$0xff] %vm57, %v1819
    // Predicated region
    $region30: #{tpu_custom_call.1} parent=1 // pred_check
      _
    $region31: #{tpu_custom_call.1} parent=1 // pred_check_branch
      %1824 = sbr.rel (0) target = $region33
    $region32: #{tpu_custom_call.1} parent=1 // pred_region
      %s1826 = ssub.s32 128, 128
      %1827 = vsyncadd [#allocation3], %s1826
      %s1829 = sshll.u32 [#allocation2], 4
      %s1830 = int_to_ptr.vmem [resolvable:$true] %s1829
      %1832 = dma.vmem_to_hbm [thread:$0]  %s1830, 128, %s7, [#allocation3]
    $region33: #{tpu_custom_call.1} parent=1 // pred_fallthru
      _
    // Predicated region
    $region34: #{tpu_custom_call.1} parent=1 // pred_check
      _
    $region35: #{tpu_custom_call.1} parent=1 // pred_check_branch
      %1834 = sbr.rel (0) target = $region37
    $region36: #{tpu_custom_call.1} parent=1 // pred_region
      %1835 = dma.done [#allocation3], 128
    $region37: #{tpu_custom_call.1} parent=1 // pred_fallthru
      _
    %1836 = vsyncpa [#allocation3], 1

</llo_original>
